<compile_context>
chip_gen: v7x
topology: tpu7x:2x2x1
jax: 0.10.0
libtpu: 0.0.40
codegen_flags: <defaults>
</compile_context>

<pallas_src>
import functools

import jax
import jax.numpy as jnp
import numpy as np
from jax.experimental import pallas as pl
from jax.experimental.pallas import tpu as pltpu


def _adaptive_avg_pool3d(x, s):
    # Matches nn.AdaptiveAvgPool3d((s, s, s)) when D, H, W are divisible by s.
    N, C, D, H, W = x.shape
    assert D % s == 0 and H % s == 0 and W % s == 0, "expect divisible dims"
    # TODO(synk): non-divisible spatial dims would need PyTorch's unequal-bin
    # adaptive pooling decomposition.
    x = x.reshape(N, C, s, D // s, s, H // s, s, W // s)
    return x.mean(axis=(3, 5, 7))                      # (N, C, s, s, s)


def _info_nce_kernel(aa_ref, bb_ref, params_ref, out_ref, *,
                     c, half, inv_temp, use_static_max):
    """Single-step InfoNCE kernel.

    aa_ref / bb_ref : (N*M, C) region features of view 1 / view 2.
    params_ref      : (2C+2, C) packed projection head [w1; w2; b1; b2].
    out_ref         : (1, 1) SMEM scalar loss.
    """
    hp = jax.lax.Precision.HIGHEST
    R = 2 * half

    # Fused concat + f32 cast of the two views (tiny, VMEM resident).
    mm = jnp.concatenate([aa_ref[...], bb_ref[...]], axis=0).astype(jnp.float32)

    # Unpack the projection head from the single packed operand.
    w1 = params_ref[0:c, :]                    # (C, C)
    w2 = params_ref[c:2 * c, :]                # (C, C)
    b1 = params_ref[2 * c:2 * c + 1, :]        # (1, C)
    b2 = params_ref[2 * c + 1:2 * c + 2, :]    # (1, C)

    # Projection head: Linear -> ReLU -> Linear (tiny MXU matmuls).
    h = jnp.dot(mm, w1, preferred_element_type=jnp.float32, precision=hp) + b1
    h = jnp.maximum(h, 0.0)
    h = jnp.dot(h, w2, preferred_element_type=jnp.float32, precision=hp) + b2

    # Cosine-normalize and fold the temperature BEFORE the Gram:
    # hn_i . hn_j == cos(h_i, h_j) / T.  O(R*C) work, all VPU/EUP.
    sq = jnp.sum(h * h, axis=1, keepdims=True)                    # (R, 1)
    inv_norm = jax.lax.rsqrt(jnp.maximum(sq, jnp.float32(1e-24)))  # eps=1e-12
    hn = h * (inv_norm * jnp.float32(np.sqrt(inv_temp)))           # (R, C)

    # Gram matrix on the MXU: logits_ij = cos_ij / T.
    logits = jax.lax.dot_general(hn, hn, (((1,), (1,)), ((), ())),
                                 preferred_element_type=jnp.float32,
                                 precision=hp)                     # (R, R)

    # Positive term without an (R, R) mask: row i's positive is row i +- half,
    # so the per-pair positive logit is a (half, 1) O(R*C) VPU reduction and
    # its total contribution to the loss is 2 * sum(p).
    p = jnp.sum(hn[:half, :] * hn[half:, :], axis=1, keepdims=True)  # (half, 1)

    # Log-sum-exp over the off-diagonal entries of each row.  The diagonal
    # `where` is fused straight into the exp operand (no `ml` temporary).
    row_i = jax.lax.broadcasted_iota(jnp.int32, (R, R), 0)
    col_i = jax.lax.broadcasted_iota(jnp.int32, (R, R), 1)
    masked = jnp.where(row_i == col_i, jnp.float32(-1e30), logits)

    if use_static_max:
        # Cosine logits are bounded by 1/T, so the row max is static.
        m = jnp.float32(inv_temp)
        lse = m + jnp.log(jnp.sum(jnp.exp(masked - m), axis=1, keepdims=True))
    else:
        # Fallback for very small temperatures (exp(-2/T) underflow in f32).
        m = jnp.max(masked, axis=1, keepdims=True)
        lse = m + jnp.log(jnp.sum(jnp.exp(masked - m), axis=1, keepdims=True))

    loss = (jnp.sum(lse) - 2.0 * jnp.sum(p)) * jnp.float32(1.0 / R)
    out_ref[0, 0] = loss


def region_loss_3d_info(p1, p2, w1, b1, w2, b2, spatial_size, temperature=0.1):
    """Pallas implementation of RegionLoss_3D_info.forward."""
    N, C = p1.shape[0], p1.shape[1]
    s = spatial_size
    M = s ** 3
    assert C == w1.shape[0], "channel count must match the projection head"

    # One fused HBM-read reduction per view.
    p1a = _adaptive_avg_pool3d(p1, s)                  # (N, C, s, s, s)
    p2a = _adaptive_avg_pool3d(p2, s)

    # pooled.view(N, C, -1).transpose(2, 1).flatten(0, 1) — tiny re-layout of
    # the pooled tensors only; the concat / cast happen inside the kernel.
    aa = p1a.reshape(N, C, M).transpose(0, 2, 1).reshape(N * M, C)
    bb = p2a.reshape(N, C, M).transpose(0, 2, 1).reshape(N * M, C)

    # Pack the whole projection head into one (2C+2, C) f32 operand:
    # rows [0:C) = w1, [C:2C) = w2, [2C] = b1, [2C+1] = b2.
    params = jnp.concatenate(
        [w1.astype(jnp.float32),
         w2.astype(jnp.float32),
         b1.reshape(1, -1).astype(jnp.float32),
         b2.reshape(1, -1).astype(jnp.float32)], axis=0)

    inv_temp = float(1.0 / temperature)
    kernel = functools.partial(
        _info_nce_kernel, c=C, half=N * M, inv_temp=inv_temp,
        use_static_max=bool(temperature >= 0.02))

    out = pl.pallas_call(
        kernel,
        out_shape=jax.ShapeDtypeStruct((1, 1), jnp.float32),
        in_specs=[pl.BlockSpec(memory_space=pltpu.MemorySpace.VMEM)] * 3,
        out_specs=pl.BlockSpec(memory_space=pltpu.MemorySpace.SMEM),
    )(aa, bb, params)

    return out[0, 0]


def _reference_loss(p1, p2, w1, b1, w2, b2, spatial_size, temperature=0.1):
    # Pure-JAX reference mirroring the PyTorch forward (for verification).
    hp = jax.lax.Precision.HIGHEST
    N, C = p1.shape[0], p1.shape[1]
    s = spatial_size
    M = s ** 3
    p1a = _adaptive_avg_pool3d(p1, s)
    p2a = _adaptive_avg_pool3d(p2, s)
    aa = p1a.reshape(N, C, M).transpose(0, 2, 1).reshape(N * M, C)
    bb = p2a.reshape(N, C, M).transpose(0, 2, 1).reshape(N * M, C)
    mm = jnp.concatenate([aa, bb], axis=0).astype(jnp.float32)

    h = jnp.maximum(jnp.dot(mm, w1, precision=hp) + b1[None, :], 0.0)
    h = jnp.dot(h, w2, precision=hp) + b2[None, :]
    f = h / jnp.maximum(jnp.linalg.norm(h, axis=1, keepdims=True), 1e-12)
    sim = jnp.dot(f, f.T, precision=hp)

    R = sim.shape[0]
    S = R // 2
    idx = np.arange(R)
    pos = sim[idx, (idx + S) % R] / temperature
    logits = jnp.where(np.eye(R, dtype=bool), -jnp.inf, sim / temperature)
    lse = jax.scipy.special.logsumexp(logits, axis=1)
    return jnp.mean(lse - pos)


if __name__ == "__main__":
    key = jax.random.PRNGKey(0)
    k1, k2, k3, k4, k5, k6 = jax.random.split(key, 6)

    # NCDHW 3-D feature maps; channels fixed at 16 by the module's
    # project_head (nn.Linear(16, 16)).
    N, C, D, H, W = 2, 16, 8, 8, 8
    spatial_size = 2                     # pooled to (2, 2, 2) -> 8 regions
    temperature = 0.1

    p1 = jax.random.normal(k1, (N, C, D, H, W), dtype=jnp.float32)
    p2 = jax.random.normal(k2, (N, C, D, H, W), dtype=jnp.float32)

    lim = 1.0 / np.sqrt(C)               # nn.Linear default init range
    w1 = jax.random.uniform(k3, (C, C), jnp.float32, -lim, lim)
    b1 = jax.random.uniform(k4, (C,), jnp.float32, -lim, lim)
    w2 = jax.random.uniform(k5, (C, C), jnp.float32, -lim, lim)
    b2 = jax.random.uniform(k6, (C,), jnp.float32, -lim, lim)

    loss = region_loss_3d_info(p1, p2, w1, b1, w2, b2, spatial_size, temperature)
    loss = jax.block_until_ready(loss)

    ref = jax.block_until_ready(
        _reference_loss(p1, p2, w1, b1, w2, b2, spatial_size, temperature))

    assert jnp.isfinite(loss), loss
    assert jnp.allclose(loss, ref, rtol=1e-3, atol=1e-3), (loss, ref)

    print("KERNEL_OK")
</pallas_src>

<mosaic_0001>
module attributes {stable_mosaic.version = 11 : i64} {
  func.func @_info_nce_kernel(%arg0: memref<16x16xf32, #tpu.memory_space<vmem>>, %arg1: memref<16x16xf32, #tpu.memory_space<vmem>>, %arg2: memref<34x16xf32, #tpu.memory_space<vmem>>, %arg3: memref<1x1xf32, #tpu.memory_space<smem>>) attributes {dimension_semantics = [], scalar_prefetch = 0 : i64, scratch_operands = 0 : i64, tpu.core_type = #tpu.core_type<tc>} {
    %c0 = arith.constant 0 : index
    %c0_0 = arith.constant 0 : index
    %0 = vector.load %arg0[%c0, %c0_0] : memref<16x16xf32, #tpu.memory_space<vmem>>, vector<16x16xf32>
    %c0_1 = arith.constant 0 : index
    %c0_2 = arith.constant 0 : index
    %1 = vector.load %arg1[%c0_1, %c0_2] : memref<16x16xf32, #tpu.memory_space<vmem>>, vector<16x16xf32>
    %2 = tpu.concatenate %0, %1 in 0 : vector<16x16xf32>, vector<16x16xf32> -> vector<32x16xf32>
    %c0_3 = arith.constant 0 : index
    %c0_4 = arith.constant 0 : index
    %3 = vector.load %arg2[%c0_3, %c0_4] : memref<34x16xf32, #tpu.memory_space<vmem>>, vector<16x16xf32>
    %c16 = arith.constant 16 : index
    %c0_5 = arith.constant 0 : index
    %4 = vector.load %arg2[%c16, %c0_5] : memref<34x16xf32, #tpu.memory_space<vmem>>, vector<16x16xf32>
    %c32 = arith.constant 32 : index
    %c0_6 = arith.constant 0 : index
    %5 = vector.load %arg2[%c32, %c0_6] : memref<34x16xf32, #tpu.memory_space<vmem>>, vector<1x16xf32>
    %c33 = arith.constant 33 : index
    %c0_7 = arith.constant 0 : index
    %6 = vector.load %arg2[%c33, %c0_7] : memref<34x16xf32, #tpu.memory_space<vmem>>, vector<1x16xf32>
    %cst = arith.constant dense<0.000000e+00> : vector<32x16xf32>
    %7 = tpu.matmul %2, %3, %cst {dimension_numbers = #tpu.dot_dimension_numbers<[1], [0], [0], [1], [0, 0, 1, 1], [], []>, precision = #tpu.contract_precision<fp32>} : vector<32x16xf32>, vector<16x16xf32>, vector<32x16xf32> -> vector<32x16xf32>
    %8 = vector.broadcast %5 : vector<1x16xf32> to vector<32x16xf32>
    %9 = arith.addf %7, %8 : vector<32x16xf32>
    %cst_8 = arith.constant 0.000000e+00 : f32
    %10 = vector.broadcast %cst_8 : f32 to vector<32x16xf32>
    %11 = arith.maximumf %9, %10 : vector<32x16xf32>
    %cst_9 = arith.constant dense<0.000000e+00> : vector<32x16xf32>
    %12 = tpu.matmul %11, %4, %cst_9 {dimension_numbers = #tpu.dot_dimension_numbers<[1], [0], [0], [1], [0, 0, 1, 1], [], []>, precision = #tpu.contract_precision<fp32>} : vector<32x16xf32>, vector<16x16xf32>, vector<32x16xf32> -> vector<32x16xf32>
    %13 = vector.broadcast %6 : vector<1x16xf32> to vector<32x16xf32>
    %14 = arith.addf %12, %13 : vector<32x16xf32>
    %15 = arith.mulf %14, %14 : vector<32x16xf32>
    %cst_10 = arith.constant dense<0.000000e+00> : vector<32xf32>
    %16 = vector.multi_reduction <add>, %15, %cst_10 [1] : vector<32x16xf32> to vector<32xf32>
    %17 = vector.shape_cast %16 : vector<32xf32> to vector<32x1xf32>
    %cst_11 = arith.constant 1.000000e-24 : f32
    %18 = vector.broadcast %cst_11 : f32 to vector<32x1xf32>
    %19 = arith.maximumf %17, %18 : vector<32x1xf32>
    %20 = math.rsqrt %19 : vector<32x1xf32>
    %cst_12 = arith.constant 3.1622777 : f32
    %21 = vector.broadcast %cst_12 : f32 to vector<32x1xf32>
    %22 = arith.mulf %20, %21 : vector<32x1xf32>
    %23 = vector.broadcast %22 : vector<32x1xf32> to vector<32x16xf32>
    %24 = arith.mulf %14, %23 : vector<32x16xf32>
    %cst_13 = arith.constant dense<0.000000e+00> : vector<32x32xf32>
    %25 = tpu.matmul %24, %24, %cst_13 {dimension_numbers = #tpu.dot_dimension_numbers<[1], [1], [0], [0], [0, 0, 1, 0], [], []>, precision = #tpu.contract_precision<fp32>} : vector<32x16xf32>, vector<32x16xf32>, vector<32x32xf32> -> vector<32x32xf32>
    %26 = vector.extract_strided_slice %24 {offsets = [0, 0], sizes = [16, 16], strides = [1, 1]} : vector<32x16xf32> to vector<16x16xf32>
    %27 = vector.extract_strided_slice %24 {offsets = [16, 0], sizes = [16, 16], strides = [1, 1]} : vector<32x16xf32> to vector<16x16xf32>
    %28 = arith.mulf %26, %27 : vector<16x16xf32>
    %cst_14 = arith.constant dense<0.000000e+00> : vector<16xf32>
    %29 = vector.multi_reduction <add>, %28, %cst_14 [1] : vector<16x16xf32> to vector<16xf32>
    %30 = vector.shape_cast %29 : vector<16xf32> to vector<16x1xf32>
    %31 = tpu.iota {dimensions = array<i32: 0>} : vector<32x32xi32>
    %32 = tpu.iota {dimensions = array<i32: 1>} : vector<32x32xi32>
    %33 = arith.cmpi eq, %31, %32 : vector<32x32xi32>
    %cst_15 = arith.constant -1.000000e+30 : f32
    %34 = vector.broadcast %cst_15 : f32 to vector<32x32xf32>
    %35 = arith.select %33, %34, %25 : vector<32x32xi1>, vector<32x32xf32>
    %cst_16 = arith.constant 1.000000e+01 : f32
    %36 = vector.broadcast %cst_16 : f32 to vector<32x32xf32>
    %37 = arith.subf %35, %36 : vector<32x32xf32>
    %38 = math.exp %37 : vector<32x32xf32>
    %cst_17 = arith.constant dense<0.000000e+00> : vector<32xf32>
    %39 = vector.multi_reduction <add>, %38, %cst_17 [1] : vector<32x32xf32> to vector<32xf32>
    %40 = vector.shape_cast %39 : vector<32xf32> to vector<32x1xf32>
    %41 = math.log %40 : vector<32x1xf32>
    %cst_18 = arith.constant 1.000000e+01 : f32
    %42 = vector.broadcast %cst_18 : f32 to vector<32x1xf32>
    %43 = arith.addf %42, %41 : vector<32x1xf32>
    %44 = vector.shape_cast %43 : vector<32x1xf32> to vector<1x32x1xf32>
    %cst_19 = arith.constant dense<0.000000e+00> : vector<1xf32>
    %45 = vector.multi_reduction <add>, %44, %cst_19 [1, 2] : vector<1x32x1xf32> to vector<1xf32>
    %46 = vector.shape_cast %45 : vector<1xf32> to vector<1x1x1xf32>
    %47 = vector.extract %46[0, 0, 0] : f32 from vector<1x1x1xf32>
    %48 = vector.shape_cast %30 : vector<16x1xf32> to vector<1x16x1xf32>
    %cst_20 = arith.constant dense<0.000000e+00> : vector<1xf32>
    %49 = vector.multi_reduction <add>, %48, %cst_20 [1, 2] : vector<1x16x1xf32> to vector<1xf32>
    %50 = vector.shape_cast %49 : vector<1xf32> to vector<1x1x1xf32>
    %51 = vector.extract %50[0, 0, 0] : f32 from vector<1x1x1xf32>
    %cst_21 = arith.constant 2.000000e+00 : f32
    %52 = arith.mulf %cst_21, %51 : f32
    %53 = arith.subf %47, %52 : f32
    %cst_22 = arith.constant 3.125000e-02 : f32
    %54 = arith.mulf %53, %cst_22 : f32
    %c0_23 = arith.constant 0 : index
    %c0_24 = arith.constant 0 : index
    %55 = memref.load %arg3[%c0_23, %c0_24] : memref<1x1xf32, #tpu.memory_space<smem>>
    memref.store %54, %arg3[%c0_23, %c0_24] : memref<1x1xf32, #tpu.memory_space<smem>>
    return
  }
}

</mosaic_0001>

<llo_original>
// kernel: tpu_custom_call.1
$region0: #{tpu_custom_call.1}
  #allocation0 [shape = 'u32[]', space=smem, size = 0x4, offset = 0x4, fixed_abs, tag = 'smem constant byte address 0x4 - core index']
  #allocation1 [shape = 'u32[144,128]{1,0:T(1,128)}', space=vmem, size = 0x12000, scoped, tag = 'internal scratch']
  %s0 = inlined_call_operand.vmem [shape: f32[16,16], index: 0, kind: input, shape index: {}]
  %s1 = inlined_call_operand.vmem [shape: f32[16,16], index: 1, kind: input, shape index: {}]
  %s2 = inlined_call_operand.vmem [shape: f32[34,16], index: 2, kind: input, shape index: {}]
  %s3 = inlined_call_operand.hbm [shape: f32[1,1], index: 3, kind: output, shape index: {}]
  %s4 = sld [smem:[#allocation0]]
  $region22: #{tpu_custom_call.1} parent=0
    _
  %s6 = ssub.s32 1, %s4
  %s7 = scalar_select 0, %s6, %s4
  $region1: #{tpu_custom_call.1} parent=0
    #allocation2 [shape = 'u8[512]{0}', space=smem, size = 0x200, scoped, tag = 'output window, operand 0, single buffered']
    #allocation3 [shape = 's32[1]{0}', space=sflag, size = 0x4, scoped, tag = 'scoped memory for tpu_custom_call.1']
    %8 = vsyncpa [#allocation3], 0
    // Predicated region
    $region2: #{tpu_custom_call.1} parent=1 // pred_check
      _
    $region3: #{tpu_custom_call.1} parent=1 // pred_check_branch
      %10 = sbr.rel (0) target = $region5
    $region4: #{tpu_custom_call.1} parent=1 // pred_region
      _
    $region5: #{tpu_custom_call.1} parent=1 // pred_fallthru
      _
    // Predicated region
    $region6: #{tpu_custom_call.1} parent=1 // pred_check
      _
    $region7: #{tpu_custom_call.1} parent=1 // pred_check_branch
      %12 = sbr.rel (0) target = $region9
    $region8: #{tpu_custom_call.1} parent=1 // pred_region
      _
    $region9: #{tpu_custom_call.1} parent=1 // pred_fallthru
      _
    // Predicated region
    $region10: #{tpu_custom_call.1} parent=1 // pred_check
      _
    $region11: #{tpu_custom_call.1} parent=1 // pred_check_branch
      %14 = sbr.rel (0) target = $region13
    $region12: #{tpu_custom_call.1} parent=1 // pred_region
      _
    $region13: #{tpu_custom_call.1} parent=1 // pred_fallthru
      _
    %v15 = vld [vmem:[%s0] sm:$0xff]
    %v16 = vld [vmem:[%s0 + $0x8] sm:$0xff]
    %v17 = vld [vmem:[%s1] sm:$0xff]
    %v18 = vld [vmem:[%s1 + $0x8] sm:$0xff]
    %v19 = vld [vmem:[%s2] sm:$0xff]
    %v20 = vld [vmem:[%s2 + $0x8] sm:$0xff]
    %v21 = vld [vmem:[%s2 + $0x10] sm:$0xff]
    %v22 = vld [vmem:[%s2 + $0x18] sm:$0xff]
    %v23 = vld [vmem:[%s2 + $0x20] sm:$0x1]
    %v24 = vld [vmem:[%s2 + $0x21] sm:$0x1]
    %v25 = vlaneseq
    %v26 = vshrl.u32 %v25, 7
    %v27 = vsub.s32 0, %v26
    %v28 = vrot.slane %v23, %v27
    %vm29 = vcmask 130048
    %v31 = vsel %vm29, %v15, 0
    %v34 = vsel %vm29, %v16, 0
    %v37 = vsel %vm29, %v17, 0
    %v40 = vsel %vm29, %v18, 0
    %42 = vmatprep.subr.mxu0 0.0
    %v43 = vand.u32 %v19, 4294901760
    %44 = vmatpush1.msra.mxu0 %v43
    %45 = vmatprep.subr.mxu0 0.0
    %v46 = vand.u32 %v20, 4294901760
    %47 = vmatpush1.msra.mxu0 %v46
    %48 = vmatprep.subr.mxu0 0.0
    %49 = vmatpush1.msra.mxu0 0.0
    %50 = vmatprep.subr.mxu0 0.0
    %51 = vmatpush1.msra.mxu0 0.0
    %52 = vmatprep.subr.mxu0 0.0
    %53 = vmatpush1.msra.mxu0 0.0
    %54 = vmatprep.subr.mxu0 0.0
    %55 = vmatpush1.msra.mxu0 0.0
    %56 = vmatprep.subr.mxu0 0.0
    %57 = vmatpush1.msra.mxu0 0.0
    %58 = vmatprep.subr.mxu0 0.0
    %59 = vmatpush1.msra.mxu0 0.0
    %60 = vmatprep.subr.mxu0 0.0
    %61 = vmatpush1.msra.mxu0 0.0
    %62 = vmatprep.subr.mxu0 0.0
    %63 = vmatpush1.msra.mxu0 0.0
    %64 = vmatprep.subr.mxu0 0.0
    %65 = vmatpush1.msra.mxu0 0.0
    %66 = vmatprep.subr.mxu0 0.0
    %67 = vmatpush1.msra.mxu0 0.0
    %68 = vmatprep.subr.mxu0 0.0
    %69 = vmatpush1.msra.mxu0 0.0
    %70 = vmatprep.subr.mxu0 0.0
    %71 = vmatpush1.msra.mxu0 0.0
    %72 = vmatprep.subr.mxu0 0.0
    %73 = vmatpush1.msra.mxu0 0.0
    %74 = vmatprep.subr.mxu0 0.0
    %75 = vmatpush1.msra.mxu0 0.0
    %76 = vmatprep.subr.mxu0 0.0
    %77 = vmatpush1.msra.mxu0 0.0
    %78 = vmatprep.subr.mxu0 0.0
    %79 = vmatpush1.msra.mxu0 0.0
    %80 = vmatprep.subr.mxu0 0.0
    %81 = vmatpush1.msra.mxu0 0.0
    %82 = vmatprep.subr.mxu0 0.0
    %83 = vmatpush1.msra.mxu0 0.0
    %84 = vmatprep.subr.mxu0 0.0
    %85 = vmatpush1.msra.mxu0 0.0
    %86 = vmatprep.subr.mxu0 0.0
    %87 = vmatpush1.msra.mxu0 0.0
    %88 = vmatprep.subr.mxu0 0.0
    %89 = vmatpush1.msra.mxu0 0.0
    %90 = vmatprep.subr.mxu0 0.0
    %91 = vmatpush1.msra.mxu0 0.0
    %92 = vmatprep.subr.mxu0 0.0
    %93 = vmatpush1.msra.mxu0 0.0
    %94 = vmatprep.subr.mxu0 0.0
    %95 = vmatpush1.msra.mxu0 0.0
    %96 = vmatprep.subr.mxu0 0.0
    %97 = vmatpush1.msra.mxu0 0.0
    %98 = vmatprep.subr.mxu0 0.0
    %99 = vmatpush1.msra.mxu0 0.0
    %100 = vmatprep.subr.mxu0 0.0
    %101 = vmatpush1.msra.mxu0 0.0
    %102 = vmatprep.subr.mxu0 0.0
    %103 = vmatpush1.msra.mxu0 0.0
    %104 = vmatprep.subr.mxu0 0.0
    %105 = vmatpush1.msra.mxu0 0.0
    %106 = vmatprep.subr.mxu0 0.0
    %107 = vmatpush1.msra.mxu0 0.0
    %108 = vmatprep.mubr.f32.mxu0 0.0
    %v109 = vand.u32 %v31, 4294901760
    %v110 = vsub.f32 %v31, %v109
    %v111 = vand.u32 %v110, 4294901760
    %v112 = vsub.f32 %v110, %v111
    %v113 = vand.u32 %v112, 4294901760
    %114 = vmatmul.mubr.f32.gmra.mrb[0].mxu0 %v113
    %v115 = vpop.f32.mrb[0].mxu0
    %v116 = vadd.f32 %v28, %v115
    %v117 = vpop.f32.mrb[0].mxu0
    %118 = vmatprep.mubr.f32.mxu0 0.0
    %v119 = vand.u32 %v34, 4294901760
    %v120 = vsub.f32 %v34, %v119
    %v121 = vand.u32 %v120, 4294901760
    %v122 = vsub.f32 %v120, %v121
    %v123 = vand.u32 %v122, 4294901760
    %124 = vmatmul.mubr.f32.gmra.mrb[0].mxu0 %v123
    %v125 = vpop.f32.mrb[0].mxu0
    %v126 = vadd.f32 %v28, %v125
    %v127 = vpop.f32.mrb[0].mxu0
    %128 = vmatprep.mubr.f32.mxu0 0.0
    %v129 = vand.u32 %v37, 4294901760
    %v130 = vsub.f32 %v37, %v129
    %v131 = vand.u32 %v130, 4294901760
    %v132 = vsub.f32 %v130, %v131
    %v133 = vand.u32 %v132, 4294901760
    %134 = vmatmul.mubr.f32.gmra.mrb[0].mxu0 %v133
    %v135 = vpop.f32.mrb[0].mxu0
    %v136 = vadd.f32 %v28, %v135
    %v137 = vpop.f32.mrb[0].mxu0
    %138 = vmatprep.mubr.f32.mxu0 0.0
    %v139 = vand.u32 %v40, 4294901760
    %v140 = vsub.f32 %v40, %v139
    %v141 = vand.u32 %v140, 4294901760
    %v142 = vsub.f32 %v140, %v141
    %v143 = vand.u32 %v142, 4294901760
    %144 = vmatmul.mubr.f32.gmra.mrb[0].mxu0 %v143
    %v145 = vpop.f32.mrb[0].mxu0
    %v146 = vadd.f32 %v28, %v145
    %v147 = vpop.f32.mrb[0].mxu0
    %148 = vdwg.mxu0
    %149 = vmatprep.subr.mxu0 0.0
    %v150 = vand.u32 %v19, 4294901760
    %v151 = vsub.f32 %v19, %v150
    %v152 = vand.u32 %v151, 4294901760
    %v153 = vsub.f32 %v151, %v152
    %v154 = vand.u32 %v153, 4294901760
    %155 = vmatpush1.msra.mxu0 %v154
    %156 = vmatprep.subr.mxu0 0.0
    %v157 = vand.u32 %v20, 4294901760
    %v158 = vsub.f32 %v20, %v157
    %v159 = vand.u32 %v158, 4294901760
    %v160 = vsub.f32 %v158, %v159
    %v161 = vand.u32 %v160, 4294901760
    %162 = vmatpush1.msra.mxu0 %v161
    %163 = vmatprep.subr.mxu0 0.0
    %164 = vmatpush1.msra.mxu0 0.0
    %165 = vmatprep.subr.mxu0 0.0
    %166 = vmatpush1.msra.mxu0 0.0
    %167 = vmatprep.subr.mxu0 0.0
    %168 = vmatpush1.msra.mxu0 0.0
    %169 = vmatprep.subr.mxu0 0.0
    %170 = vmatpush1.msra.mxu0 0.0
    %171 = vmatprep.subr.mxu0 0.0
    %172 = vmatpush1.msra.mxu0 0.0
    %173 = vmatprep.subr.mxu0 0.0
    %174 = vmatpush1.msra.mxu0 0.0
    %175 = vmatprep.subr.mxu0 0.0
    %176 = vmatpush1.msra.mxu0 0.0
    %177 = vmatprep.subr.mxu0 0.0
    %178 = vmatpush1.msra.mxu0 0.0
    %179 = vmatprep.subr.mxu0 0.0
    %180 = vmatpush1.msra.mxu0 0.0
    %181 = vmatprep.subr.mxu0 0.0
    %182 = vmatpush1.msra.mxu0 0.0
    %183 = vmatprep.subr.mxu0 0.0
    %184 = vmatpush1.msra.mxu0 0.0
    %185 = vmatprep.subr.mxu0 0.0
    %186 = vmatpush1.msra.mxu0 0.0
    %187 = vmatprep.subr.mxu0 0.0
    %188 = vmatpush1.msra.mxu0 0.0
    %189 = vmatprep.subr.mxu0 0.0
    %190 = vmatpush1.msra.mxu0 0.0
    %191 = vmatprep.subr.mxu0 0.0
    %192 = vmatpush1.msra.mxu0 0.0
    %193 = vmatprep.subr.mxu0 0.0
    %194 = vmatpush1.msra.mxu0 0.0
    %195 = vmatprep.subr.mxu0 0.0
    %196 = vmatpush1.msra.mxu0 0.0
    %197 = vmatprep.subr.mxu0 0.0
    %198 = vmatpush1.msra.mxu0 0.0
    %199 = vmatprep.subr.mxu0 0.0
    %200 = vmatpush1.msra.mxu0 0.0
    %201 = vmatprep.subr.mxu0 0.0
    %202 = vmatpush1.msra.mxu0 0.0
    %203 = vmatprep.subr.mxu0 0.0
    %204 = vmatpush1.msra.mxu0 0.0
    %205 = vmatprep.subr.mxu0 0.0
    %206 = vmatpush1.msra.mxu0 0.0
    %207 = vmatprep.subr.mxu0 0.0
    %208 = vmatpush1.msra.mxu0 0.0
    %209 = vmatprep.subr.mxu0 0.0
    %210 = vmatpush1.msra.mxu0 0.0
    %211 = vmatprep.subr.mxu0 0.0
    %212 = vmatpush1.msra.mxu0 0.0
    %213 = vmatprep.subr.mxu0 0.0
    %214 = vmatpush1.msra.mxu0 0.0
    %215 = vmatprep.subr.mxu0 0.0
    %216 = vmatpush1.msra.mxu0 0.0
    %217 = vmatprep.subr.mxu0 0.0
    %218 = vmatpush1.msra.mxu0 0.0
    %219 = vmatprep.subr.mxu0 0.0
    %220 = vmatpush1.msra.mxu0 0.0
    %221 = vmatprep.subr.mxu0 0.0
    %222 = vmatpush1.msra.mxu0 0.0
    %223 = vmatprep.mubr.f32.mxu0 0.0
    %v224 = vand.u32 %v31, 4294901760
    %225 = vmatmul.mubr.f32.gmra.mrb[0].mxu0 %v224
    %v226 = vpop.f32.mrb[0].mxu0
    %v227 = vadd.f32 %v116, %v226
    %v228 = vpop.f32.mrb[0].mxu0
    %229 = vmatprep.mubr.f32.mxu0 0.0
    %v230 = vand.u32 %v34, 4294901760
    %231 = vmatmul.mubr.f32.gmra.mrb[0].mxu0 %v230
    %v232 = vpop.f32.mrb[0].mxu0
    %v233 = vadd.f32 %v126, %v232
    %v234 = vpop.f32.mrb[0].mxu0
    %235 = vmatprep.mubr.f32.mxu0 0.0
    %v236 = vand.u32 %v37, 4294901760
    %237 = vmatmul.mubr.f32.gmra.mrb[0].mxu0 %v236
    %v238 = vpop.f32.mrb[0].mxu0
    %v239 = vadd.f32 %v136, %v238
    %v240 = vpop.f32.mrb[0].mxu0
    %241 = vmatprep.mubr.f32.mxu0 0.0
    %v242 = vand.u32 %v40, 4294901760
    %243 = vmatmul.mubr.f32.gmra.mrb[0].mxu0 %v242
    %v244 = vpop.f32.mrb[0].mxu0
    %v245 = vadd.f32 %v146, %v244
    %v246 = vpop.f32.mrb[0].mxu0
    %247 = vdwg.mxu0
    %248 = vmatprep.subr.mxu0 0.0
    %v249 = vand.u32 %v19, 4294901760
    %v250 = vsub.f32 %v19, %v249
    %251 = vmatpush1.msra.mxu0 %v250
    %252 = vmatprep.subr.mxu0 0.0
    %v253 = vand.u32 %v20, 4294901760
    %v254 = vsub.f32 %v20, %v253
    %255 = vmatpush1.msra.mxu0 %v254
    %256 = vmatprep.subr.mxu0 0.0
    %257 = vmatpush1.msra.mxu0 0.0
    %258 = vmatprep.subr.mxu0 0.0
    %259 = vmatpush1.msra.mxu0 0.0
    %260 = vmatprep.subr.mxu0 0.0
    %261 = vmatpush1.msra.mxu0 0.0
    %262 = vmatprep.subr.mxu0 0.0
    %263 = vmatpush1.msra.mxu0 0.0
    %264 = vmatprep.subr.mxu0 0.0
    %265 = vmatpush1.msra.mxu0 0.0
    %266 = vmatprep.subr.mxu0 0.0
    %267 = vmatpush1.msra.mxu0 0.0
    %268 = vmatprep.subr.mxu0 0.0
    %269 = vmatpush1.msra.mxu0 0.0
    %270 = vmatprep.subr.mxu0 0.0
    %271 = vmatpush1.msra.mxu0 0.0
    %272 = vmatprep.subr.mxu0 0.0
    %273 = vmatpush1.msra.mxu0 0.0
    %274 = vmatprep.subr.mxu0 0.0
    %275 = vmatpush1.msra.mxu0 0.0
    %276 = vmatprep.subr.mxu0 0.0
    %277 = vmatpush1.msra.mxu0 0.0
    %278 = vmatprep.subr.mxu0 0.0
    %279 = vmatpush1.msra.mxu0 0.0
    %280 = vmatprep.subr.mxu0 0.0
    %281 = vmatpush1.msra.mxu0 0.0
    %282 = vmatprep.subr.mxu0 0.0
    %283 = vmatpush1.msra.mxu0 0.0
    %284 = vmatprep.subr.mxu0 0.0
    %285 = vmatpush1.msra.mxu0 0.0
    %286 = vmatprep.subr.mxu0 0.0
    %287 = vmatpush1.msra.mxu0 0.0
    %288 = vmatprep.subr.mxu0 0.0
    %289 = vmatpush1.msra.mxu0 0.0
    %290 = vmatprep.subr.mxu0 0.0
    %291 = vmatpush1.msra.mxu0 0.0
    %292 = vmatprep.subr.mxu0 0.0
    %293 = vmatpush1.msra.mxu0 0.0
    %294 = vmatprep.subr.mxu0 0.0
    %295 = vmatpush1.msra.mxu0 0.0
    %296 = vmatprep.subr.mxu0 0.0
    %297 = vmatpush1.msra.mxu0 0.0
    %298 = vmatprep.subr.mxu0 0.0
    %299 = vmatpush1.msra.mxu0 0.0
    %300 = vmatprep.subr.mxu0 0.0
    %301 = vmatpush1.msra.mxu0 0.0
    %302 = vmatprep.subr.mxu0 0.0
    %303 = vmatpush1.msra.mxu0 0.0
    %304 = vmatprep.subr.mxu0 0.0
    %305 = vmatpush1.msra.mxu0 0.0
    %306 = vmatprep.subr.mxu0 0.0
    %307 = vmatpush1.msra.mxu0 0.0
    %308 = vmatprep.subr.mxu0 0.0
    %309 = vmatpush1.msra.mxu0 0.0
    %310 = vmatprep.subr.mxu0 0.0
    %311 = vmatpush1.msra.mxu0 0.0
    %312 = vmatprep.subr.mxu0 0.0
    %313 = vmatpush1.msra.mxu0 0.0
    %314 = vmatprep.subr.mxu0 0.0
    %315 = vmatpush1.msra.mxu0 0.0
    %316 = vmatprep.mubr.f32.mxu0 0.0
    %v317 = vand.u32 %v31, 4294901760
    %v318 = vsub.f32 %v31, %v317
    %319 = vmatmul.mubr.f32.gmra.mrb[0].mxu0 %v318
    %v320 = vpop.f32.mrb[0].mxu0
    %v321 = vadd.f32 %v227, %v320
    %v322 = vpop.f32.mrb[0].mxu0
    %323 = vmatprep.mubr.f32.mxu0 0.0
    %v324 = vand.u32 %v34, 4294901760
    %v325 = vsub.f32 %v34, %v324
    %326 = vmatmul.mubr.f32.gmra.mrb[0].mxu0 %v325
    %v327 = vpop.f32.mrb[0].mxu0
    %v328 = vadd.f32 %v233, %v327
    %v329 = vpop.f32.mrb[0].mxu0
    %330 = vmatprep.mubr.f32.mxu0 0.0
    %v331 = vand.u32 %v37, 4294901760
    %v332 = vsub.f32 %v37, %v331
    %333 = vmatmul.mubr.f32.gmra.mrb[0].mxu0 %v332
    %v334 = vpop.f32.mrb[0].mxu0
    %v335 = vadd.f32 %v239, %v334
    %v336 = vpop.f32.mrb[0].mxu0
    %337 = vmatprep.mubr.f32.mxu0 0.0
    %v338 = vand.u32 %v40, 4294901760
    %v339 = vsub.f32 %v40, %v338
    %340 = vmatmul.mubr.f32.gmra.mrb[0].mxu0 %v339
    %v341 = vpop.f32.mrb[0].mxu0
    %v342 = vadd.f32 %v245, %v341
    %v343 = vpop.f32.mrb[0].mxu0
    %344 = vdwg.mxu0
    %345 = vmatprep.subr.mxu0 0.0
    %v346 = vand.u32 %v19, 4294901760
    %347 = vmatpush1.msra.mxu0 %v346
    %348 = vmatprep.subr.mxu0 0.0
    %v349 = vand.u32 %v20, 4294901760
    %350 = vmatpush1.msra.mxu0 %v349
    %351 = vmatprep.subr.mxu0 0.0
    %352 = vmatpush1.msra.mxu0 0.0
    %353 = vmatprep.subr.mxu0 0.0
    %354 = vmatpush1.msra.mxu0 0.0
    %355 = vmatprep.subr.mxu0 0.0
    %356 = vmatpush1.msra.mxu0 0.0
    %357 = vmatprep.subr.mxu0 0.0
    %358 = vmatpush1.msra.mxu0 0.0
    %359 = vmatprep.subr.mxu0 0.0
    %360 = vmatpush1.msra.mxu0 0.0
    %361 = vmatprep.subr.mxu0 0.0
    %362 = vmatpush1.msra.mxu0 0.0
    %363 = vmatprep.subr.mxu0 0.0
    %364 = vmatpush1.msra.mxu0 0.0
    %365 = vmatprep.subr.mxu0 0.0
    %366 = vmatpush1.msra.mxu0 0.0
    %367 = vmatprep.subr.mxu0 0.0
    %368 = vmatpush1.msra.mxu0 0.0
    %369 = vmatprep.subr.mxu0 0.0
    %370 = vmatpush1.msra.mxu0 0.0
    %371 = vmatprep.subr.mxu0 0.0
    %372 = vmatpush1.msra.mxu0 0.0
    %373 = vmatprep.subr.mxu0 0.0
    %374 = vmatpush1.msra.mxu0 0.0
    %375 = vmatprep.subr.mxu0 0.0
    %376 = vmatpush1.msra.mxu0 0.0
    %377 = vmatprep.subr.mxu0 0.0
    %378 = vmatpush1.msra.mxu0 0.0
    %379 = vmatprep.subr.mxu0 0.0
    %380 = vmatpush1.msra.mxu0 0.0
    %381 = vmatprep.subr.mxu0 0.0
    %382 = vmatpush1.msra.mxu0 0.0
    %383 = vmatprep.subr.mxu0 0.0
    %384 = vmatpush1.msra.mxu0 0.0
    %385 = vmatprep.subr.mxu0 0.0
    %386 = vmatpush1.msra.mxu0 0.0
    %387 = vmatprep.subr.mxu0 0.0
    %388 = vmatpush1.msra.mxu0 0.0
    %389 = vmatprep.subr.mxu0 0.0
    %390 = vmatpush1.msra.mxu0 0.0
    %391 = vmatprep.subr.mxu0 0.0
    %392 = vmatpush1.msra.mxu0 0.0
    %393 = vmatprep.subr.mxu0 0.0
    %394 = vmatpush1.msra.mxu0 0.0
    %395 = vmatprep.subr.mxu0 0.0
    %396 = vmatpush1.msra.mxu0 0.0
    %397 = vmatprep.subr.mxu0 0.0
    %398 = vmatpush1.msra.mxu0 0.0
    %399 = vmatprep.subr.mxu0 0.0
    %400 = vmatpush1.msra.mxu0 0.0
    %401 = vmatprep.subr.mxu0 0.0
    %402 = vmatpush1.msra.mxu0 0.0
    %403 = vmatprep.subr.mxu0 0.0
    %404 = vmatpush1.msra.mxu0 0.0
    %405 = vmatprep.subr.mxu0 0.0
    %406 = vmatpush1.msra.mxu0 0.0
    %407 = vmatprep.subr.mxu0 0.0
    %408 = vmatpush1.msra.mxu0 0.0
    %409 = vmatprep.subr.mxu0 0.0
    %410 = vmatpush1.msra.mxu0 0.0
    %411 = vmatprep.mubr.f32.mxu0 0.0
    %v412 = vand.u32 %v31, 4294901760
    %v413 = vsub.f32 %v31, %v412
    %v414 = vand.u32 %v413, 4294901760
    %415 = vmatmul.mubr.f32.gmra.mrb[0].mxu0 %v414
    %v416 = vpop.f32.mrb[0].mxu0
    %v417 = vadd.f32 %v321, %v416
    %v418 = vpop.f32.mrb[0].mxu0
    %419 = vmatprep.mubr.f32.mxu0 0.0
    %v420 = vand.u32 %v34, 4294901760
    %v421 = vsub.f32 %v34, %v420
    %v422 = vand.u32 %v421, 4294901760
    %423 = vmatmul.mubr.f32.gmra.mrb[0].mxu0 %v422
    %v424 = vpop.f32.mrb[0].mxu0
    %v425 = vadd.f32 %v328, %v424
    %v426 = vpop.f32.mrb[0].mxu0
    %427 = vmatprep.mubr.f32.mxu0 0.0
    %v428 = vand.u32 %v37, 4294901760
    %v429 = vsub.f32 %v37, %v428
    %v430 = vand.u32 %v429, 4294901760
    %431 = vmatmul.mubr.f32.gmra.mrb[0].mxu0 %v430
    %v432 = vpop.f32.mrb[0].mxu0
    %v433 = vadd.f32 %v335, %v432
    %v434 = vpop.f32.mrb[0].mxu0
    %435 = vmatprep.mubr.f32.mxu0 0.0
    %v436 = vand.u32 %v40, 4294901760
    %v437 = vsub.f32 %v40, %v436
    %v438 = vand.u32 %v437, 4294901760
    %439 = vmatmul.mubr.f32.gmra.mrb[0].mxu0 %v438
    %v440 = vpop.f32.mrb[0].mxu0
    %v441 = vadd.f32 %v342, %v440
    %v442 = vpop.f32.mrb[0].mxu0
    %443 = vdwg.mxu0
    %444 = vmatprep.subr.mxu0 0.0
    %v445 = vand.u32 %v19, 4294901760
    %v446 = vsub.f32 %v19, %v445
    %v447 = vand.u32 %v446, 4294901760
    %448 = vmatpush1.msra.mxu0 %v447
    %449 = vmatprep.subr.mxu0 0.0
    %v450 = vand.u32 %v20, 4294901760
    %v451 = vsub.f32 %v20, %v450
    %v452 = vand.u32 %v451, 4294901760
    %453 = vmatpush1.msra.mxu0 %v452
    %454 = vmatprep.subr.mxu0 0.0
    %455 = vmatpush1.msra.mxu0 0.0
    %456 = vmatprep.subr.mxu0 0.0
    %457 = vmatpush1.msra.mxu0 0.0
    %458 = vmatprep.subr.mxu0 0.0
    %459 = vmatpush1.msra.mxu0 0.0
    %460 = vmatprep.subr.mxu0 0.0
    %461 = vmatpush1.msra.mxu0 0.0
    %462 = vmatprep.subr.mxu0 0.0
    %463 = vmatpush1.msra.mxu0 0.0
    %464 = vmatprep.subr.mxu0 0.0
    %465 = vmatpush1.msra.mxu0 0.0
    %466 = vmatprep.subr.mxu0 0.0
    %467 = vmatpush1.msra.mxu0 0.0
    %468 = vmatprep.subr.mxu0 0.0
    %469 = vmatpush1.msra.mxu0 0.0
    %470 = vmatprep.subr.mxu0 0.0
    %471 = vmatpush1.msra.mxu0 0.0
    %472 = vmatprep.subr.mxu0 0.0
    %473 = vmatpush1.msra.mxu0 0.0
    %474 = vmatprep.subr.mxu0 0.0
    %475 = vmatpush1.msra.mxu0 0.0
    %476 = vmatprep.subr.mxu0 0.0
    %477 = vmatpush1.msra.mxu0 0.0
    %478 = vmatprep.subr.mxu0 0.0
    %479 = vmatpush1.msra.mxu0 0.0
    %480 = vmatprep.subr.mxu0 0.0
    %481 = vmatpush1.msra.mxu0 0.0
    %482 = vmatprep.subr.mxu0 0.0
    %483 = vmatpush1.msra.mxu0 0.0
    %484 = vmatprep.subr.mxu0 0.0
    %485 = vmatpush1.msra.mxu0 0.0
    %486 = vmatprep.subr.mxu0 0.0
    %487 = vmatpush1.msra.mxu0 0.0
    %488 = vmatprep.subr.mxu0 0.0
    %489 = vmatpush1.msra.mxu0 0.0
    %490 = vmatprep.subr.mxu0 0.0
    %491 = vmatpush1.msra.mxu0 0.0
    %492 = vmatprep.subr.mxu0 0.0
    %493 = vmatpush1.msra.mxu0 0.0
    %494 = vmatprep.subr.mxu0 0.0
    %495 = vmatpush1.msra.mxu0 0.0
    %496 = vmatprep.subr.mxu0 0.0
    %497 = vmatpush1.msra.mxu0 0.0
    %498 = vmatprep.subr.mxu0 0.0
    %499 = vmatpush1.msra.mxu0 0.0
    %500 = vmatprep.subr.mxu0 0.0
    %501 = vmatpush1.msra.mxu0 0.0
    %502 = vmatprep.subr.mxu0 0.0
    %503 = vmatpush1.msra.mxu0 0.0
    %504 = vmatprep.subr.mxu0 0.0
    %505 = vmatpush1.msra.mxu0 0.0
    %506 = vmatprep.subr.mxu0 0.0
    %507 = vmatpush1.msra.mxu0 0.0
    %508 = vmatprep.subr.mxu0 0.0
    %509 = vmatpush1.msra.mxu0 0.0
    %510 = vmatprep.subr.mxu0 0.0
    %511 = vmatpush1.msra.mxu0 0.0
    %512 = vmatprep.subr.mxu0 0.0
    %513 = vmatpush1.msra.mxu0 0.0
    %514 = vmatprep.mubr.f32.mxu0 0.0
    %v515 = vand.u32 %v31, 4294901760
    %516 = vmatmul.mubr.f32.gmra.mrb[0].mxu0 %v515
    %v517 = vpop.f32.mrb[0].mxu0
    %v518 = vadd.f32 %v417, %v517
    %v519 = vpop.f32.mrb[0].mxu0
    %520 = vmatprep.mubr.f32.mxu0 0.0
    %v521 = vand.u32 %v34, 4294901760
    %522 = vmatmul.mubr.f32.gmra.mrb[0].mxu0 %v521
    %v523 = vpop.f32.mrb[0].mxu0
    %v524 = vadd.f32 %v425, %v523
    %v525 = vpop.f32.mrb[0].mxu0
    %526 = vmatprep.mubr.f32.mxu0 0.0
    %v527 = vand.u32 %v37, 4294901760
    %528 = vmatmul.mubr.f32.gmra.mrb[0].mxu0 %v527
    %v529 = vpop.f32.mrb[0].mxu0
    %v530 = vadd.f32 %v433, %v529
    %v531 = vpop.f32.mrb[0].mxu0
    %532 = vmatprep.mubr.f32.mxu0 0.0
    %v533 = vand.u32 %v40, 4294901760
    %534 = vmatmul.mubr.f32.gmra.mrb[0].mxu0 %v533
    %v535 = vpop.f32.mrb[0].mxu0
    %v536 = vadd.f32 %v441, %v535
    %v537 = vpop.f32.mrb[0].mxu0
    %538 = vdwg.mxu0
    %539 = vmatprep.subr.mxu0 0.0
    %v540 = vand.u32 %v19, 4294901760
    %541 = vmatpush1.msra.mxu0 %v540
    %542 = vmatprep.subr.mxu0 0.0
    %v543 = vand.u32 %v20, 4294901760
    %544 = vmatpush1.msra.mxu0 %v543
    %545 = vmatprep.subr.mxu0 0.0
    %546 = vmatpush1.msra.mxu0 0.0
    %547 = vmatprep.subr.mxu0 0.0
    %548 = vmatpush1.msra.mxu0 0.0
    %549 = vmatprep.subr.mxu0 0.0
    %550 = vmatpush1.msra.mxu0 0.0
    %551 = vmatprep.subr.mxu0 0.0
    %552 = vmatpush1.msra.mxu0 0.0
    %553 = vmatprep.subr.mxu0 0.0
    %554 = vmatpush1.msra.mxu0 0.0
    %555 = vmatprep.subr.mxu0 0.0
    %556 = vmatpush1.msra.mxu0 0.0
    %557 = vmatprep.subr.mxu0 0.0
    %558 = vmatpush1.msra.mxu0 0.0
    %559 = vmatprep.subr.mxu0 0.0
    %560 = vmatpush1.msra.mxu0 0.0
    %561 = vmatprep.subr.mxu0 0.0
    %562 = vmatpush1.msra.mxu0 0.0
    %563 = vmatprep.subr.mxu0 0.0
    %564 = vmatpush1.msra.mxu0 0.0
    %565 = vmatprep.subr.mxu0 0.0
    %566 = vmatpush1.msra.mxu0 0.0
    %567 = vmatprep.subr.mxu0 0.0
    %568 = vmatpush1.msra.mxu0 0.0
    %569 = vmatprep.subr.mxu0 0.0
    %570 = vmatpush1.msra.mxu0 0.0
    %571 = vmatprep.subr.mxu0 0.0
    %572 = vmatpush1.msra.mxu0 0.0
    %573 = vmatprep.subr.mxu0 0.0
    %574 = vmatpush1.msra.mxu0 0.0
    %575 = vmatprep.subr.mxu0 0.0
    %576 = vmatpush1.msra.mxu0 0.0
    %577 = vmatprep.subr.mxu0 0.0
    %578 = vmatpush1.msra.mxu0 0.0
    %579 = vmatprep.subr.mxu0 0.0
    %580 = vmatpush1.msra.mxu0 0.0
    %581 = vmatprep.subr.mxu0 0.0
    %582 = vmatpush1.msra.mxu0 0.0
    %583 = vmatprep.subr.mxu0 0.0
    %584 = vmatpush1.msra.mxu0 0.0
    %585 = vmatprep.subr.mxu0 0.0
    %586 = vmatpush1.msra.mxu0 0.0
    %587 = vmatprep.subr.mxu0 0.0
    %588 = vmatpush1.msra.mxu0 0.0
    %589 = vmatprep.subr.mxu0 0.0
    %590 = vmatpush1.msra.mxu0 0.0
    %591 = vmatprep.subr.mxu0 0.0
    %592 = vmatpush1.msra.mxu0 0.0
    %593 = vmatprep.subr.mxu0 0.0
    %594 = vmatpush1.msra.mxu0 0.0
    %595 = vmatprep.subr.mxu0 0.0
    %596 = vmatpush1.msra.mxu0 0.0
    %597 = vmatprep.subr.mxu0 0.0
    %598 = vmatpush1.msra.mxu0 0.0
    %599 = vmatprep.subr.mxu0 0.0
    %600 = vmatpush1.msra.mxu0 0.0
    %601 = vmatprep.subr.mxu0 0.0
    %602 = vmatpush1.msra.mxu0 0.0
    %603 = vmatprep.subr.mxu0 0.0
    %604 = vmatpush1.msra.mxu0 0.0
    %605 = vmatprep.mubr.f32.mxu0 0.0
    %v606 = vand.u32 %v31, 4294901760
    %607 = vmatmul.mubr.f32.gmra.mrb[0].mxu0 %v606
    %v608 = vpop.f32.mrb[0].mxu0
    %v609 = vadd.f32 %v518, %v608
    %v610 = vpop.f32.mrb[0].mxu0
    %611 = vmatprep.mubr.f32.mxu0 0.0
    %v612 = vand.u32 %v34, 4294901760
    %613 = vmatmul.mubr.f32.gmra.mrb[0].mxu0 %v612
    %v614 = vpop.f32.mrb[0].mxu0
    %v615 = vadd.f32 %v524, %v614
    %v616 = vpop.f32.mrb[0].mxu0
    %617 = vmatprep.mubr.f32.mxu0 0.0
    %v618 = vand.u32 %v37, 4294901760
    %619 = vmatmul.mubr.f32.gmra.mrb[0].mxu0 %v618
    %v620 = vpop.f32.mrb[0].mxu0
    %v621 = vadd.f32 %v530, %v620
    %v622 = vpop.f32.mrb[0].mxu0
    %623 = vmatprep.mubr.f32.mxu0 0.0
    %v624 = vand.u32 %v40, 4294901760
    %625 = vmatmul.mubr.f32.gmra.mrb[0].mxu0 %v624
    %v626 = vpop.f32.mrb[0].mxu0
    %v627 = vadd.f32 %v536, %v626
    %v628 = vpop.f32.mrb[0].mxu0
    %629 = vdwg.mxu0
    %v630 = vmax.f32 %v609, 0.0
    %v631 = vmax.f32 %v615, 0.0
    %v632 = vmax.f32 %v621, 0.0
    %v633 = vmax.f32 %v627, 0.0
    %v634 = vlaneseq
    %v635 = vshrl.u32 %v634, 7
    %v636 = vsub.s32 0, %v635
    %v637 = vrot.slane %v24, %v636
    %v639 = vsel %vm29, %v630, 0
    %v642 = vsel %vm29, %v631, 0
    %v645 = vsel %vm29, %v632, 0
    %v648 = vsel %vm29, %v633, 0
    %650 = vmatprep.subr.mxu0 0.0
    %v651 = vand.u32 %v21, 4294901760
    %652 = vmatpush1.msra.mxu0 %v651
    %653 = vmatprep.subr.mxu0 0.0
    %v654 = vand.u32 %v22, 4294901760
    %655 = vmatpush1.msra.mxu0 %v654
    %656 = vmatprep.subr.mxu0 0.0
    %657 = vmatpush1.msra.mxu0 0.0
    %658 = vmatprep.subr.mxu0 0.0
    %659 = vmatpush1.msra.mxu0 0.0
    %660 = vmatprep.subr.mxu0 0.0
    %661 = vmatpush1.msra.mxu0 0.0
    %662 = vmatprep.subr.mxu0 0.0
    %663 = vmatpush1.msra.mxu0 0.0
    %664 = vmatprep.subr.mxu0 0.0
    %665 = vmatpush1.msra.mxu0 0.0
    %666 = vmatprep.subr.mxu0 0.0
    %667 = vmatpush1.msra.mxu0 0.0
    %668 = vmatprep.subr.mxu0 0.0
    %669 = vmatpush1.msra.mxu0 0.0
    %670 = vmatprep.subr.mxu0 0.0
    %671 = vmatpush1.msra.mxu0 0.0
    %672 = vmatprep.subr.mxu0 0.0
    %673 = vmatpush1.msra.mxu0 0.0
    %674 = vmatprep.subr.mxu0 0.0
    %675 = vmatpush1.msra.mxu0 0.0
    %676 = vmatprep.subr.mxu0 0.0
    %677 = vmatpush1.msra.mxu0 0.0
    %678 = vmatprep.subr.mxu0 0.0
    %679 = vmatpush1.msra.mxu0 0.0
    %680 = vmatprep.subr.mxu0 0.0
    %681 = vmatpush1.msra.mxu0 0.0
    %682 = vmatprep.subr.mxu0 0.0
    %683 = vmatpush1.msra.mxu0 0.0
    %684 = vmatprep.subr.mxu0 0.0
    %685 = vmatpush1.msra.mxu0 0.0
    %686 = vmatprep.subr.mxu0 0.0
    %687 = vmatpush1.msra.mxu0 0.0
    %688 = vmatprep.subr.mxu0 0.0
    %689 = vmatpush1.msra.mxu0 0.0
    %690 = vmatprep.subr.mxu0 0.0
    %691 = vmatpush1.msra.mxu0 0.0
    %692 = vmatprep.subr.mxu0 0.0
    %693 = vmatpush1.msra.mxu0 0.0
    %694 = vmatprep.subr.mxu0 0.0
    %695 = vmatpush1.msra.mxu0 0.0
    %696 = vmatprep.subr.mxu0 0.0
    %697 = vmatpush1.msra.mxu0 0.0
    %698 = vmatprep.subr.mxu0 0.0
    %699 = vmatpush1.msra.mxu0 0.0
    %700 = vmatprep.subr.mxu0 0.0
    %701 = vmatpush1.msra.mxu0 0.0
    %702 = vmatprep.subr.mxu0 0.0
    %703 = vmatpush1.msra.mxu0 0.0
    %704 = vmatprep.subr.mxu0 0.0
    %705 = vmatpush1.msra.mxu0 0.0
    %706 = vmatprep.subr.mxu0 0.0
    %707 = vmatpush1.msra.mxu0 0.0
    %708 = vmatprep.subr.mxu0 0.0
    %709 = vmatpush1.msra.mxu0 0.0
    %710 = vmatprep.subr.mxu0 0.0
    %711 = vmatpush1.msra.mxu0 0.0
    %712 = vmatprep.subr.mxu0 0.0
    %713 = vmatpush1.msra.mxu0 0.0
    %714 = vmatprep.subr.mxu0 0.0
    %715 = vmatpush1.msra.mxu0 0.0
    %716 = vmatprep.mubr.f32.mxu0 0.0
    %v717 = vand.u32 %v639, 4294901760
    %v718 = vsub.f32 %v639, %v717
    %v719 = vand.u32 %v718, 4294901760
    %v720 = vsub.f32 %v718, %v719
    %v721 = vand.u32 %v720, 4294901760
    %722 = vmatmul.mubr.f32.gmra.mrb[0].mxu0 %v721
    %v723 = vpop.f32.mrb[0].mxu0
    %v724 = vadd.f32 %v637, %v723
    %v725 = vpop.f32.mrb[0].mxu0
    %726 = vmatprep.mubr.f32.mxu0 0.0
    %v727 = vand.u32 %v642, 4294901760
    %v728 = vsub.f32 %v642, %v727
    %v729 = vand.u32 %v728, 4294901760
    %v730 = vsub.f32 %v728, %v729
    %v731 = vand.u32 %v730, 4294901760
    %732 = vmatmul.mubr.f32.gmra.mrb[0].mxu0 %v731
    %v733 = vpop.f32.mrb[0].mxu0
    %v734 = vadd.f32 %v637, %v733
    %v735 = vpop.f32.mrb[0].mxu0
    %736 = vmatprep.mubr.f32.mxu0 0.0
    %v737 = vand.u32 %v645, 4294901760
    %v738 = vsub.f32 %v645, %v737
    %v739 = vand.u32 %v738, 4294901760
    %v740 = vsub.f32 %v738, %v739
    %v741 = vand.u32 %v740, 4294901760
    %742 = vmatmul.mubr.f32.gmra.mrb[0].mxu0 %v741
    %v743 = vpop.f32.mrb[0].mxu0
    %v744 = vadd.f32 %v637, %v743
    %v745 = vpop.f32.mrb[0].mxu0
    %746 = vmatprep.mubr.f32.mxu0 0.0
    %v747 = vand.u32 %v648, 4294901760
    %v748 = vsub.f32 %v648, %v747
    %v749 = vand.u32 %v748, 4294901760
    %v750 = vsub.f32 %v748, %v749
    %v751 = vand.u32 %v750, 4294901760
    %752 = vmatmul.mubr.f32.gmra.mrb[0].mxu0 %v751
    %v753 = vpop.f32.mrb[0].mxu0
    %v754 = vadd.f32 %v637, %v753
    %v755 = vpop.f32.mrb[0].mxu0
    %756 = vdwg.mxu0
    %757 = vmatprep.subr.mxu0 0.0
    %v758 = vand.u32 %v21, 4294901760
    %v759 = vsub.f32 %v21, %v758
    %v760 = vand.u32 %v759, 4294901760
    %v761 = vsub.f32 %v759, %v760
    %v762 = vand.u32 %v761, 4294901760
    %763 = vmatpush1.msra.mxu0 %v762
    %764 = vmatprep.subr.mxu0 0.0
    %v765 = vand.u32 %v22, 4294901760
    %v766 = vsub.f32 %v22, %v765
    %v767 = vand.u32 %v766, 4294901760
    %v768 = vsub.f32 %v766, %v767
    %v769 = vand.u32 %v768, 4294901760
    %770 = vmatpush1.msra.mxu0 %v769
    %771 = vmatprep.subr.mxu0 0.0
    %772 = vmatpush1.msra.mxu0 0.0
    %773 = vmatprep.subr.mxu0 0.0
    %774 = vmatpush1.msra.mxu0 0.0
    %775 = vmatprep.subr.mxu0 0.0
    %776 = vmatpush1.msra.mxu0 0.0
    %777 = vmatprep.subr.mxu0 0.0
    %778 = vmatpush1.msra.mxu0 0.0
    %779 = vmatprep.subr.mxu0 0.0
    %780 = vmatpush1.msra.mxu0 0.0
    %781 = vmatprep.subr.mxu0 0.0
    %782 = vmatpush1.msra.mxu0 0.0
    %783 = vmatprep.subr.mxu0 0.0
    %784 = vmatpush1.msra.mxu0 0.0
    %785 = vmatprep.subr.mxu0 0.0
    %786 = vmatpush1.msra.mxu0 0.0
    %787 = vmatprep.subr.mxu0 0.0
    %788 = vmatpush1.msra.mxu0 0.0
    %789 = vmatprep.subr.mxu0 0.0
    %790 = vmatpush1.msra.mxu0 0.0
    %791 = vmatprep.subr.mxu0 0.0
    %792 = vmatpush1.msra.mxu0 0.0
    %793 = vmatprep.subr.mxu0 0.0
    %794 = vmatpush1.msra.mxu0 0.0
    %795 = vmatprep.subr.mxu0 0.0
    %796 = vmatpush1.msra.mxu0 0.0
    %797 = vmatprep.subr.mxu0 0.0
    %798 = vmatpush1.msra.mxu0 0.0
    %799 = vmatprep.subr.mxu0 0.0
    %800 = vmatpush1.msra.mxu0 0.0
    %801 = vmatprep.subr.mxu0 0.0
    %802 = vmatpush1.msra.mxu0 0.0
    %803 = vmatprep.subr.mxu0 0.0
    %804 = vmatpush1.msra.mxu0 0.0
    %805 = vmatprep.subr.mxu0 0.0
    %806 = vmatpush1.msra.mxu0 0.0
    %807 = vmatprep.subr.mxu0 0.0
    %808 = vmatpush1.msra.mxu0 0.0
    %809 = vmatprep.subr.mxu0 0.0
    %810 = vmatpush1.msra.mxu0 0.0
    %811 = vmatprep.subr.mxu0 0.0
    %812 = vmatpush1.msra.mxu0 0.0
    %813 = vmatprep.subr.mxu0 0.0
    %814 = vmatpush1.msra.mxu0 0.0
    %815 = vmatprep.subr.mxu0 0.0
    %816 = vmatpush1.msra.mxu0 0.0
    %817 = vmatprep.subr.mxu0 0.0
    %818 = vmatpush1.msra.mxu0 0.0
    %819 = vmatprep.subr.mxu0 0.0
    %820 = vmatpush1.msra.mxu0 0.0
    %821 = vmatprep.subr.mxu0 0.0
    %822 = vmatpush1.msra.mxu0 0.0
    %823 = vmatprep.subr.mxu0 0.0
    %824 = vmatpush1.msra.mxu0 0.0
    %825 = vmatprep.subr.mxu0 0.0
    %826 = vmatpush1.msra.mxu0 0.0
    %827 = vmatprep.subr.mxu0 0.0
    %828 = vmatpush1.msra.mxu0 0.0
    %829 = vmatprep.subr.mxu0 0.0
    %830 = vmatpush1.msra.mxu0 0.0
    %831 = vmatprep.mubr.f32.mxu0 0.0
    %v832 = vand.u32 %v639, 4294901760
    %833 = vmatmul.mubr.f32.gmra.mrb[0].mxu0 %v832
    %v834 = vpop.f32.mrb[0].mxu0
    %v835 = vadd.f32 %v724, %v834
    %v836 = vpop.f32.mrb[0].mxu0
    %837 = vmatprep.mubr.f32.mxu0 0.0
    %v838 = vand.u32 %v642, 4294901760
    %839 = vmatmul.mubr.f32.gmra.mrb[0].mxu0 %v838
    %v840 = vpop.f32.mrb[0].mxu0
    %v841 = vadd.f32 %v734, %v840
    %v842 = vpop.f32.mrb[0].mxu0
    %843 = vmatprep.mubr.f32.mxu0 0.0
    %v844 = vand.u32 %v645, 4294901760
    %845 = vmatmul.mubr.f32.gmra.mrb[0].mxu0 %v844
    %v846 = vpop.f32.mrb[0].mxu0
    %v847 = vadd.f32 %v744, %v846
    %v848 = vpop.f32.mrb[0].mxu0
    %849 = vmatprep.mubr.f32.mxu0 0.0
    %v850 = vand.u32 %v648, 4294901760
    %851 = vmatmul.mubr.f32.gmra.mrb[0].mxu0 %v850
    %v852 = vpop.f32.mrb[0].mxu0
    %v853 = vadd.f32 %v754, %v852
    %v854 = vpop.f32.mrb[0].mxu0
    %855 = vdwg.mxu0
    %856 = vmatprep.subr.mxu0 0.0
    %v857 = vand.u32 %v21, 4294901760
    %v858 = vsub.f32 %v21, %v857
    %859 = vmatpush1.msra.mxu0 %v858
    %860 = vmatprep.subr.mxu0 0.0
    %v861 = vand.u32 %v22, 4294901760
    %v862 = vsub.f32 %v22, %v861
    %863 = vmatpush1.msra.mxu0 %v862
    %864 = vmatprep.subr.mxu0 0.0
    %865 = vmatpush1.msra.mxu0 0.0
    %866 = vmatprep.subr.mxu0 0.0
    %867 = vmatpush1.msra.mxu0 0.0
    %868 = vmatprep.subr.mxu0 0.0
    %869 = vmatpush1.msra.mxu0 0.0
    %870 = vmatprep.subr.mxu0 0.0
    %871 = vmatpush1.msra.mxu0 0.0
    %872 = vmatprep.subr.mxu0 0.0
    %873 = vmatpush1.msra.mxu0 0.0
    %874 = vmatprep.subr.mxu0 0.0
    %875 = vmatpush1.msra.mxu0 0.0
    %876 = vmatprep.subr.mxu0 0.0
    %877 = vmatpush1.msra.mxu0 0.0
    %878 = vmatprep.subr.mxu0 0.0
    %879 = vmatpush1.msra.mxu0 0.0
    %880 = vmatprep.subr.mxu0 0.0
    %881 = vmatpush1.msra.mxu0 0.0
    %882 = vmatprep.subr.mxu0 0.0
    %883 = vmatpush1.msra.mxu0 0.0
    %884 = vmatprep.subr.mxu0 0.0
    %885 = vmatpush1.msra.mxu0 0.0
    %886 = vmatprep.subr.mxu0 0.0
    %887 = vmatpush1.msra.mxu0 0.0
    %888 = vmatprep.subr.mxu0 0.0
    %889 = vmatpush1.msra.mxu0 0.0
    %890 = vmatprep.subr.mxu0 0.0
    %891 = vmatpush1.msra.mxu0 0.0
    %892 = vmatprep.subr.mxu0 0.0
    %893 = vmatpush1.msra.mxu0 0.0
    %894 = vmatprep.subr.mxu0 0.0
    %895 = vmatpush1.msra.mxu0 0.0
    %896 = vmatprep.subr.mxu0 0.0
    %897 = vmatpush1.msra.mxu0 0.0
    %898 = vmatprep.subr.mxu0 0.0
    %899 = vmatpush1.msra.mxu0 0.0
    %900 = vmatprep.subr.mxu0 0.0
    %901 = vmatpush1.msra.mxu0 0.0
    %902 = vmatprep.subr.mxu0 0.0
    %903 = vmatpush1.msra.mxu0 0.0
    %904 = vmatprep.subr.mxu0 0.0
    %905 = vmatpush1.msra.mxu0 0.0
    %906 = vmatprep.subr.mxu0 0.0
    %907 = vmatpush1.msra.mxu0 0.0
    %908 = vmatprep.subr.mxu0 0.0
    %909 = vmatpush1.msra.mxu0 0.0
    %910 = vmatprep.subr.mxu0 0.0
    %911 = vmatpush1.msra.mxu0 0.0
    %912 = vmatprep.subr.mxu0 0.0
    %913 = vmatpush1.msra.mxu0 0.0
    %914 = vmatprep.subr.mxu0 0.0
    %915 = vmatpush1.msra.mxu0 0.0
    %916 = vmatprep.subr.mxu0 0.0
    %917 = vmatpush1.msra.mxu0 0.0
    %918 = vmatprep.subr.mxu0 0.0
    %919 = vmatpush1.msra.mxu0 0.0
    %920 = vmatprep.subr.mxu0 0.0
    %921 = vmatpush1.msra.mxu0 0.0
    %922 = vmatprep.subr.mxu0 0.0
    %923 = vmatpush1.msra.mxu0 0.0
    %924 = vmatprep.mubr.f32.mxu0 0.0
    %v925 = vand.u32 %v639, 4294901760
    %v926 = vsub.f32 %v639, %v925
    %927 = vmatmul.mubr.f32.gmra.mrb[0].mxu0 %v926
    %v928 = vpop.f32.mrb[0].mxu0
    %v929 = vadd.f32 %v835, %v928
    %v930 = vpop.f32.mrb[0].mxu0
    %931 = vmatprep.mubr.f32.mxu0 0.0
    %v932 = vand.u32 %v642, 4294901760
    %v933 = vsub.f32 %v642, %v932
    %934 = vmatmul.mubr.f32.gmra.mrb[0].mxu0 %v933
    %v935 = vpop.f32.mrb[0].mxu0
    %v936 = vadd.f32 %v841, %v935
    %v937 = vpop.f32.mrb[0].mxu0
    %938 = vmatprep.mubr.f32.mxu0 0.0
    %v939 = vand.u32 %v645, 4294901760
    %v940 = vsub.f32 %v645, %v939
    %941 = vmatmul.mubr.f32.gmra.mrb[0].mxu0 %v940
    %v942 = vpop.f32.mrb[0].mxu0
    %v943 = vadd.f32 %v847, %v942
    %v944 = vpop.f32.mrb[0].mxu0
    %945 = vmatprep.mubr.f32.mxu0 0.0
    %v946 = vand.u32 %v648, 4294901760
    %v947 = vsub.f32 %v648, %v946
    %948 = vmatmul.mubr.f32.gmra.mrb[0].mxu0 %v947
    %v949 = vpop.f32.mrb[0].mxu0
    %v950 = vadd.f32 %v853, %v949
    %v951 = vpop.f32.mrb[0].mxu0
    %952 = vdwg.mxu0
    %953 = vmatprep.subr.mxu0 0.0
    %v954 = vand.u32 %v21, 4294901760
    %955 = vmatpush1.msra.mxu0 %v954
    %956 = vmatprep.subr.mxu0 0.0
    %v957 = vand.u32 %v22, 4294901760
    %958 = vmatpush1.msra.mxu0 %v957
    %959 = vmatprep.subr.mxu0 0.0
    %960 = vmatpush1.msra.mxu0 0.0
    %961 = vmatprep.subr.mxu0 0.0
    %962 = vmatpush1.msra.mxu0 0.0
    %963 = vmatprep.subr.mxu0 0.0
    %964 = vmatpush1.msra.mxu0 0.0
    %965 = vmatprep.subr.mxu0 0.0
    %966 = vmatpush1.msra.mxu0 0.0
    %967 = vmatprep.subr.mxu0 0.0
    %968 = vmatpush1.msra.mxu0 0.0
    %969 = vmatprep.subr.mxu0 0.0
    %970 = vmatpush1.msra.mxu0 0.0
    %971 = vmatprep.subr.mxu0 0.0
    %972 = vmatpush1.msra.mxu0 0.0
    %973 = vmatprep.subr.mxu0 0.0
    %974 = vmatpush1.msra.mxu0 0.0
    %975 = vmatprep.subr.mxu0 0.0
    %976 = vmatpush1.msra.mxu0 0.0
    %977 = vmatprep.subr.mxu0 0.0
    %978 = vmatpush1.msra.mxu0 0.0
    %979 = vmatprep.subr.mxu0 0.0
    %980 = vmatpush1.msra.mxu0 0.0
    %981 = vmatprep.subr.mxu0 0.0
    %982 = vmatpush1.msra.mxu0 0.0
    %983 = vmatprep.subr.mxu0 0.0
    %984 = vmatpush1.msra.mxu0 0.0
    %985 = vmatprep.subr.mxu0 0.0
    %986 = vmatpush1.msra.mxu0 0.0
    %987 = vmatprep.subr.mxu0 0.0
    %988 = vmatpush1.msra.mxu0 0.0
    %989 = vmatprep.subr.mxu0 0.0
    %990 = vmatpush1.msra.mxu0 0.0
    %991 = vmatprep.subr.mxu0 0.0
    %992 = vmatpush1.msra.mxu0 0.0
    %993 = vmatprep.subr.mxu0 0.0
    %994 = vmatpush1.msra.mxu0 0.0
    %995 = vmatprep.subr.mxu0 0.0
    %996 = vmatpush1.msra.mxu0 0.0
    %997 = vmatprep.subr.mxu0 0.0
    %998 = vmatpush1.msra.mxu0 0.0
    %999 = vmatprep.subr.mxu0 0.0
    %1000 = vmatpush1.msra.mxu0 0.0
    %1001 = vmatprep.subr.mxu0 0.0
    %1002 = vmatpush1.msra.mxu0 0.0
    %1003 = vmatprep.subr.mxu0 0.0
    %1004 = vmatpush1.msra.mxu0 0.0
    %1005 = vmatprep.subr.mxu0 0.0
    %1006 = vmatpush1.msra.mxu0 0.0
    %1007 = vmatprep.subr.mxu0 0.0
    %1008 = vmatpush1.msra.mxu0 0.0
    %1009 = vmatprep.subr.mxu0 0.0
    %1010 = vmatpush1.msra.mxu0 0.0
    %1011 = vmatprep.subr.mxu0 0.0
    %1012 = vmatpush1.msra.mxu0 0.0
    %1013 = vmatprep.subr.mxu0 0.0
    %1014 = vmatpush1.msra.mxu0 0.0
    %1015 = vmatprep.subr.mxu0 0.0
    %1016 = vmatpush1.msra.mxu0 0.0
    %1017 = vmatprep.subr.mxu0 0.0
    %1018 = vmatpush1.msra.mxu0 0.0
    %1019 = vmatprep.mubr.f32.mxu0 0.0
    %v1020 = vand.u32 %v639, 4294901760
    %v1021 = vsub.f32 %v639, %v1020
    %v1022 = vand.u32 %v1021, 4294901760
    %1023 = vmatmul.mubr.f32.gmra.mrb[0].mxu0 %v1022
    %v1024 = vpop.f32.mrb[0].mxu0
    %v1025 = vadd.f32 %v929, %v1024
    %v1026 = vpop.f32.mrb[0].mxu0
    %1027 = vmatprep.mubr.f32.mxu0 0.0
    %v1028 = vand.u32 %v642, 4294901760
    %v1029 = vsub.f32 %v642, %v1028
    %v1030 = vand.u32 %v1029, 4294901760
    %1031 = vmatmul.mubr.f32.gmra.mrb[0].mxu0 %v1030
    %v1032 = vpop.f32.mrb[0].mxu0
    %v1033 = vadd.f32 %v936, %v1032
    %v1034 = vpop.f32.mrb[0].mxu0
    %1035 = vmatprep.mubr.f32.mxu0 0.0
    %v1036 = vand.u32 %v645, 4294901760
    %v1037 = vsub.f32 %v645, %v1036
    %v1038 = vand.u32 %v1037, 4294901760
    %1039 = vmatmul.mubr.f32.gmra.mrb[0].mxu0 %v1038
    %v1040 = vpop.f32.mrb[0].mxu0
    %v1041 = vadd.f32 %v943, %v1040
    %v1042 = vpop.f32.mrb[0].mxu0
    %1043 = vmatprep.mubr.f32.mxu0 0.0
    %v1044 = vand.u32 %v648, 4294901760
    %v1045 = vsub.f32 %v648, %v1044
    %v1046 = vand.u32 %v1045, 4294901760
    %1047 = vmatmul.mubr.f32.gmra.mrb[0].mxu0 %v1046
    %v1048 = vpop.f32.mrb[0].mxu0
    %v1049 = vadd.f32 %v950, %v1048
    %v1050 = vpop.f32.mrb[0].mxu0
    %1051 = vdwg.mxu0
    %1052 = vmatprep.subr.mxu0 0.0
    %v1053 = vand.u32 %v21, 4294901760
    %v1054 = vsub.f32 %v21, %v1053
    %v1055 = vand.u32 %v1054, 4294901760
    %1056 = vmatpush1.msra.mxu0 %v1055
    %1057 = vmatprep.subr.mxu0 0.0
    %v1058 = vand.u32 %v22, 4294901760
    %v1059 = vsub.f32 %v22, %v1058
    %v1060 = vand.u32 %v1059, 4294901760
    %1061 = vmatpush1.msra.mxu0 %v1060
    %1062 = vmatprep.subr.mxu0 0.0
    %1063 = vmatpush1.msra.mxu0 0.0
    %1064 = vmatprep.subr.mxu0 0.0
    %1065 = vmatpush1.msra.mxu0 0.0
    %1066 = vmatprep.subr.mxu0 0.0
    %1067 = vmatpush1.msra.mxu0 0.0
    %1068 = vmatprep.subr.mxu0 0.0
    %1069 = vmatpush1.msra.mxu0 0.0
    %1070 = vmatprep.subr.mxu0 0.0
    %1071 = vmatpush1.msra.mxu0 0.0
    %1072 = vmatprep.subr.mxu0 0.0
    %1073 = vmatpush1.msra.mxu0 0.0
    %1074 = vmatprep.subr.mxu0 0.0
    %1075 = vmatpush1.msra.mxu0 0.0
    %1076 = vmatprep.subr.mxu0 0.0
    %1077 = vmatpush1.msra.mxu0 0.0
    %1078 = vmatprep.subr.mxu0 0.0
    %1079 = vmatpush1.msra.mxu0 0.0
    %1080 = vmatprep.subr.mxu0 0.0
    %1081 = vmatpush1.msra.mxu0 0.0
    %1082 = vmatprep.subr.mxu0 0.0
    %1083 = vmatpush1.msra.mxu0 0.0
    %1084 = vmatprep.subr.mxu0 0.0
    %1085 = vmatpush1.msra.mxu0 0.0
    %1086 = vmatprep.subr.mxu0 0.0
    %1087 = vmatpush1.msra.mxu0 0.0
    %1088 = vmatprep.subr.mxu0 0.0
    %1089 = vmatpush1.msra.mxu0 0.0
    %1090 = vmatprep.subr.mxu0 0.0
    %1091 = vmatpush1.msra.mxu0 0.0
    %1092 = vmatprep.subr.mxu0 0.0
    %1093 = vmatpush1.msra.mxu0 0.0
    %1094 = vmatprep.subr.mxu0 0.0
    %1095 = vmatpush1.msra.mxu0 0.0
    %1096 = vmatprep.subr.mxu0 0.0
    %1097 = vmatpush1.msra.mxu0 0.0
    %1098 = vmatprep.subr.mxu0 0.0
    %1099 = vmatpush1.msra.mxu0 0.0
    %1100 = vmatprep.subr.mxu0 0.0
    %1101 = vmatpush1.msra.mxu0 0.0
    %1102 = vmatprep.subr.mxu0 0.0
    %1103 = vmatpush1.msra.mxu0 0.0
    %1104 = vmatprep.subr.mxu0 0.0
    %1105 = vmatpush1.msra.mxu0 0.0
    %1106 = vmatprep.subr.mxu0 0.0
    %1107 = vmatpush1.msra.mxu0 0.0
    %1108 = vmatprep.subr.mxu0 0.0
    %1109 = vmatpush1.msra.mxu0 0.0
    %1110 = vmatprep.subr.mxu0 0.0
    %1111 = vmatpush1.msra.mxu0 0.0
    %1112 = vmatprep.subr.mxu0 0.0
    %1113 = vmatpush1.msra.mxu0 0.0
    %1114 = vmatprep.subr.mxu0 0.0
    %1115 = vmatpush1.msra.mxu0 0.0
    %1116 = vmatprep.subr.mxu0 0.0
    %1117 = vmatpush1.msra.mxu0 0.0
    %1118 = vmatprep.subr.mxu0 0.0
    %1119 = vmatpush1.msra.mxu0 0.0
    %1120 = vmatprep.subr.mxu0 0.0
    %1121 = vmatpush1.msra.mxu0 0.0
    %1122 = vmatprep.mubr.f32.mxu0 0.0
    %v1123 = vand.u32 %v639, 4294901760
    %1124 = vmatmul.mubr.f32.gmra.mrb[0].mxu0 %v1123
    %v1125 = vpop.f32.mrb[0].mxu0
    %v1126 = vadd.f32 %v1025, %v1125
    %v1127 = vpop.f32.mrb[0].mxu0
    %1128 = vmatprep.mubr.f32.mxu0 0.0
    %v1129 = vand.u32 %v642, 4294901760
    %1130 = vmatmul.mubr.f32.gmra.mrb[0].mxu0 %v1129
    %v1131 = vpop.f32.mrb[0].mxu0
    %v1132 = vadd.f32 %v1033, %v1131
    %v1133 = vpop.f32.mrb[0].mxu0
    %1134 = vmatprep.mubr.f32.mxu0 0.0
    %v1135 = vand.u32 %v645, 4294901760
    %1136 = vmatmul.mubr.f32.gmra.mrb[0].mxu0 %v1135
    %v1137 = vpop.f32.mrb[0].mxu0
    %v1138 = vadd.f32 %v1041, %v1137
    %v1139 = vpop.f32.mrb[0].mxu0
    %1140 = vmatprep.mubr.f32.mxu0 0.0
    %v1141 = vand.u32 %v648, 4294901760
    %1142 = vmatmul.mubr.f32.gmra.mrb[0].mxu0 %v1141
    %v1143 = vpop.f32.mrb[0].mxu0
    %v1144 = vadd.f32 %v1049, %v1143
    %v1145 = vpop.f32.mrb[0].mxu0
    %1146 = vdwg.mxu0
    %1147 = vmatprep.subr.mxu0 0.0
    %v1148 = vand.u32 %v21, 4294901760
    %1149 = vmatpush1.msra.mxu0 %v1148
    %1150 = vmatprep.subr.mxu0 0.0
    %v1151 = vand.u32 %v22, 4294901760
    %1152 = vmatpush1.msra.mxu0 %v1151
    %1153 = vmatprep.subr.mxu0 0.0
    %1154 = vmatpush1.msra.mxu0 0.0
    %1155 = vmatprep.subr.mxu0 0.0
    %1156 = vmatpush1.msra.mxu0 0.0
    %1157 = vmatprep.subr.mxu0 0.0
    %1158 = vmatpush1.msra.mxu0 0.0
    %1159 = vmatprep.subr.mxu0 0.0
    %1160 = vmatpush1.msra.mxu0 0.0
    %1161 = vmatprep.subr.mxu0 0.0
    %1162 = vmatpush1.msra.mxu0 0.0
    %1163 = vmatprep.subr.mxu0 0.0
    %1164 = vmatpush1.msra.mxu0 0.0
    %1165 = vmatprep.subr.mxu0 0.0
    %1166 = vmatpush1.msra.mxu0 0.0
    %1167 = vmatprep.subr.mxu0 0.0
    %1168 = vmatpush1.msra.mxu0 0.0
    %1169 = vmatprep.subr.mxu0 0.0
    %1170 = vmatpush1.msra.mxu0 0.0
    %1171 = vmatprep.subr.mxu0 0.0
    %1172 = vmatpush1.msra.mxu0 0.0
    %1173 = vmatprep.subr.mxu0 0.0
    %1174 = vmatpush1.msra.mxu0 0.0
    %1175 = vmatprep.subr.mxu0 0.0
    %1176 = vmatpush1.msra.mxu0 0.0
    %1177 = vmatprep.subr.mxu0 0.0
    %1178 = vmatpush1.msra.mxu0 0.0
    %1179 = vmatprep.subr.mxu0 0.0
    %1180 = vmatpush1.msra.mxu0 0.0
    %1181 = vmatprep.subr.mxu0 0.0
    %1182 = vmatpush1.msra.mxu0 0.0
    %1183 = vmatprep.subr.mxu0 0.0
    %1184 = vmatpush1.msra.mxu0 0.0
    %1185 = vmatprep.subr.mxu0 0.0
    %1186 = vmatpush1.msra.mxu0 0.0
    %1187 = vmatprep.subr.mxu0 0.0
    %1188 = vmatpush1.msra.mxu0 0.0
    %1189 = vmatprep.subr.mxu0 0.0
    %1190 = vmatpush1.msra.mxu0 0.0
    %1191 = vmatprep.subr.mxu0 0.0
    %1192 = vmatpush1.msra.mxu0 0.0
    %1193 = vmatprep.subr.mxu0 0.0
    %1194 = vmatpush1.msra.mxu0 0.0
    %1195 = vmatprep.subr.mxu0 0.0
    %1196 = vmatpush1.msra.mxu0 0.0
    %1197 = vmatprep.subr.mxu0 0.0
    %1198 = vmatpush1.msra.mxu0 0.0
    %1199 = vmatprep.subr.mxu0 0.0
    %1200 = vmatpush1.msra.mxu0 0.0
    %1201 = vmatprep.subr.mxu0 0.0
    %1202 = vmatpush1.msra.mxu0 0.0
    %1203 = vmatprep.subr.mxu0 0.0
    %1204 = vmatpush1.msra.mxu0 0.0
    %1205 = vmatprep.subr.mxu0 0.0
    %1206 = vmatpush1.msra.mxu0 0.0
    %1207 = vmatprep.subr.mxu0 0.0
    %1208 = vmatpush1.msra.mxu0 0.0
    %1209 = vmatprep.subr.mxu0 0.0
    %1210 = vmatpush1.msra.mxu0 0.0
    %1211 = vmatprep.subr.mxu0 0.0
    %1212 = vmatpush1.msra.mxu0 0.0
    %1213 = vmatprep.mubr.f32.mxu0 0.0
    %v1214 = vand.u32 %v639, 4294901760
    %1215 = vmatmul.mubr.f32.gmra.mrb[0].mxu0 %v1214
    %v1216 = vpop.f32.mrb[0].mxu0
    %v1217 = vadd.f32 %v1126, %v1216
    %v1218 = vpop.f32.mrb[0].mxu0
    %1219 = vmatprep.mubr.f32.mxu0 0.0
    %v1220 = vand.u32 %v642, 4294901760
    %1221 = vmatmul.mubr.f32.gmra.mrb[0].mxu0 %v1220
    %v1222 = vpop.f32.mrb[0].mxu0
    %v1223 = vadd.f32 %v1132, %v1222
    %v1224 = vpop.f32.mrb[0].mxu0
    %1225 = vmatprep.mubr.f32.mxu0 0.0
    %v1226 = vand.u32 %v645, 4294901760
    %1227 = vmatmul.mubr.f32.gmra.mrb[0].mxu0 %v1226
    %v1228 = vpop.f32.mrb[0].mxu0
    %v1229 = vadd.f32 %v1138, %v1228
    %v1230 = vpop.f32.mrb[0].mxu0
    %1231 = vmatprep.mubr.f32.mxu0 0.0
    %v1232 = vand.u32 %v648, 4294901760
    %1233 = vmatmul.mubr.f32.gmra.mrb[0].mxu0 %v1232
    %v1234 = vpop.f32.mrb[0].mxu0
    %v1235 = vadd.f32 %v1144, %v1234
    %v1236 = vpop.f32.mrb[0].mxu0
    %1237 = vdwg.mxu0
    %v1238 = vmul.f32 %v1217, %v1217
    %v1239 = vmul.f32 %v1223, %v1223
    %v1240 = vmul.f32 %v1229, %v1229
    %v1241 = vmul.f32 %v1235, %v1235
    %v1242 = vsel %vm29, %v1238, 0.0
    %1243 = vadd.xlane.f32.xlu0 %v1242
    %v1244 = vpop.xlane.xlu0 %1243
    %v1245 = vsel %vm29, %v1239, 0.0
    %1246 = vadd.xlane.f32.xlu0 %v1245
    %v1247 = vpop.xlane.xlu0 %1246
    %v1248 = vsel %vm29, %v1240, 0.0
    %1249 = vadd.xlane.f32.xlu0 %v1248
    %v1250 = vpop.xlane.xlu0 %1249
    %v1251 = vsel %vm29, %v1241, 0.0
    %1252 = vadd.xlane.f32.xlu0 %v1251
    %v1253 = vpop.xlane.xlu0 %1252
    %v1254 = vmax.f32 %v1244, 1e-24
    %v1255 = vmax.f32 %v1247, 1e-24
    %v1256 = vmax.f32 %v1250, 1e-24
    %v1257 = vmax.f32 %v1253, 1e-24
    %v1258 = vrsqrt.pop %v1254
    %v1259 = vrsqrt.pop %v1255
    %v1260 = vrsqrt.pop %v1256
    %v1261 = vrsqrt.pop %v1257
    %v1262 = vmul.f32 %v1258, 3.1622777
    %v1263 = vmul.f32 %v1259, 3.1622777
    %v1264 = vmul.f32 %v1260, 3.1622777
    %v1265 = vmul.f32 %v1261, 3.1622777
    %v1266 = vmul.f32 %v1217, %v1262
    %v1267 = vmul.f32 %v1223, %v1263
    %v1268 = vmul.f32 %v1229, %v1264
    %v1269 = vmul.f32 %v1235, %v1265
    %v1271 = vsel %vm29, %v1266, 0
    %v1274 = vsel %vm29, %v1267, 0
    %v1277 = vsel %vm29, %v1268, 0
    %v1280 = vsel %vm29, %v1269, 0
    %1282 = vmatprep.subr.mxu0 0.0
    %v1283 = vand.u32 %v1271, 4294901760
    %1284 = vmatpush1.xpose.msra.mxu0 %v1283
    %1285 = vmatprep.subr.mxu0 0.0
    %v1286 = vand.u32 %v1274, 4294901760
    %1287 = vmatpush1.xpose.msra.mxu0 %v1286
    %1288 = vmatprep.subr.mxu0 0.0
    %v1289 = vand.u32 %v1277, 4294901760
    %1290 = vmatpush1.xpose.msra.mxu0 %v1289
    %1291 = vmatprep.subr.mxu0 0.0
    %v1292 = vand.u32 %v1280, 4294901760
    %1293 = vmatpush1.xpose.msra.mxu0 %v1292
    %1294 = vmatprep.subr.mxu0 0.0
    %1295 = vmatpush1.xpose.msra.mxu0 0.0
    %1296 = vmatprep.subr.mxu0 0.0
    %1297 = vmatpush1.xpose.msra.mxu0 0.0
    %1298 = vmatprep.subr.mxu0 0.0
    %1299 = vmatpush1.xpose.msra.mxu0 0.0
    %1300 = vmatprep.subr.mxu0 0.0
    %1301 = vmatpush1.xpose.msra.mxu0 0.0
    %1302 = vmatprep.subr.mxu0 0.0
    %1303 = vmatpush1.xpose.msra.mxu0 0.0
    %1304 = vmatprep.subr.mxu0 0.0
    %1305 = vmatpush1.xpose.msra.mxu0 0.0
    %1306 = vmatprep.subr.mxu0 0.0
    %1307 = vmatpush1.xpose.msra.mxu0 0.0
    %1308 = vmatprep.subr.mxu0 0.0
    %1309 = vmatpush1.xpose.msra.mxu0 0.0
    %1310 = vmatprep.subr.mxu0 0.0
    %1311 = vmatpush1.xpose.msra.mxu0 0.0
    %1312 = vmatprep.subr.mxu0 0.0
    %1313 = vmatpush1.xpose.msra.mxu0 0.0
    %1314 = vmatprep.subr.mxu0 0.0
    %1315 = vmatpush1.xpose.msra.mxu0 0.0
    %1316 = vmatprep.subr.mxu0 0.0
    %1317 = vmatpush1.xpose.msra.mxu0 0.0
    %1318 = vmatprep.subr.mxu0 0.0
    %1319 = vmatpush1.xpose.msra.mxu0 0.0
    %1320 = vmatprep.subr.mxu0 0.0
    %1321 = vmatpush1.xpose.msra.mxu0 0.0
    %1322 = vmatprep.subr.mxu0 0.0
    %1323 = vmatpush1.xpose.msra.mxu0 0.0
    %1324 = vmatprep.subr.mxu0 0.0
    %1325 = vmatpush1.xpose.msra.mxu0 0.0
    %1326 = vmatprep.subr.mxu0 0.0
    %1327 = vmatpush1.xpose.msra.mxu0 0.0
    %1328 = vmatprep.subr.mxu0 0.0
    %1329 = vmatpush1.xpose.msra.mxu0 0.0
    %1330 = vmatprep.subr.mxu0 0.0
    %1331 = vmatpush1.xpose.msra.mxu0 0.0
    %1332 = vmatprep.subr.mxu0 0.0
    %1333 = vmatpush1.xpose.msra.mxu0 0.0
    %1334 = vmatprep.subr.mxu0 0.0
    %1335 = vmatpush1.xpose.msra.mxu0 0.0
    %1336 = vmatprep.subr.mxu0 0.0
    %1337 = vmatpush1.xpose.msra.mxu0 0.0
    %1338 = vmatprep.subr.mxu0 0.0
    %1339 = vmatpush1.xpose.msra.mxu0 0.0
    %1340 = vmatprep.subr.mxu0 0.0
    %1341 = vmatpush1.xpose.msra.mxu0 0.0
    %1342 = vmatprep.subr.mxu0 0.0
    %1343 = vmatpush1.xpose.msra.mxu0 0.0
    %1344 = vmatprep.subr.mxu0 0.0
    %1345 = vmatpush1.xpose.msra.mxu0 0.0
    %1346 = vmatprep.subr.mxu0 0.0
    %1347 = vmatpush1.xpose.msra.mxu0 0.0
    %1348 = vmatprep.subr.mxu0 0.0
    %1349 = vmatpush1.xpose.msra.mxu0 0.0
    %1350 = vmatprep.mubr.f32.mxu0 0.0
    %v1351 = vand.u32 %v1271, 4294901760
    %v1352 = vsub.f32 %v1271, %v1351
    %v1353 = vand.u32 %v1352, 4294901760
    %v1354 = vsub.f32 %v1352, %v1353
    %v1355 = vand.u32 %v1354, 4294901760
    %1356 = vmatmul.mubr.f32.gmra.mrb[0].mxu0 %v1355
    %v1357 = vpop.f32.mrb[0].mxu0
    %v1358 = vadd.f32 0.0, %v1357
    %v1359 = vpop.f32.mrb[0].mxu0
    %1360 = vmatprep.mubr.f32.mxu0 0.0
    %v1361 = vand.u32 %v1274, 4294901760
    %v1362 = vsub.f32 %v1274, %v1361
    %v1363 = vand.u32 %v1362, 4294901760
    %v1364 = vsub.f32 %v1362, %v1363
    %v1365 = vand.u32 %v1364, 4294901760
    %1366 = vmatmul.mubr.f32.gmra.mrb[0].mxu0 %v1365
    %v1367 = vpop.f32.mrb[0].mxu0
    %v1368 = vadd.f32 0.0, %v1367
    %v1369 = vpop.f32.mrb[0].mxu0
    %1370 = vmatprep.mubr.f32.mxu0 0.0
    %v1371 = vand.u32 %v1277, 4294901760
    %v1372 = vsub.f32 %v1277, %v1371
    %v1373 = vand.u32 %v1372, 4294901760
    %v1374 = vsub.f32 %v1372, %v1373
    %v1375 = vand.u32 %v1374, 4294901760
    %1376 = vmatmul.mubr.f32.gmra.mrb[0].mxu0 %v1375
    %v1377 = vpop.f32.mrb[0].mxu0
    %v1378 = vadd.f32 0.0, %v1377
    %v1379 = vpop.f32.mrb[0].mxu0
    %1380 = vmatprep.mubr.f32.mxu0 0.0
    %v1381 = vand.u32 %v1280, 4294901760
    %v1382 = vsub.f32 %v1280, %v1381
    %v1383 = vand.u32 %v1382, 4294901760
    %v1384 = vsub.f32 %v1382, %v1383
    %v1385 = vand.u32 %v1384, 4294901760
    %1386 = vmatmul.mubr.f32.gmra.mrb[0].mxu0 %v1385
    %v1387 = vpop.f32.mrb[0].mxu0
    %v1388 = vadd.f32 0.0, %v1387
    %v1389 = vpop.f32.mrb[0].mxu0
    %1390 = vdwg.mxu0
    %1391 = vmatprep.subr.mxu0 0.0
    %v1392 = vand.u32 %v1271, 4294901760
    %v1393 = vsub.f32 %v1271, %v1392
    %v1394 = vand.u32 %v1393, 4294901760
    %v1395 = vsub.f32 %v1393, %v1394
    %v1396 = vand.u32 %v1395, 4294901760
    %1397 = vmatpush1.xpose.msra.mxu0 %v1396
    %1398 = vmatprep.subr.mxu0 0.0
    %v1399 = vand.u32 %v1274, 4294901760
    %v1400 = vsub.f32 %v1274, %v1399
    %v1401 = vand.u32 %v1400, 4294901760
    %v1402 = vsub.f32 %v1400, %v1401
    %v1403 = vand.u32 %v1402, 4294901760
    %1404 = vmatpush1.xpose.msra.mxu0 %v1403
    %1405 = vmatprep.subr.mxu0 0.0
    %v1406 = vand.u32 %v1277, 4294901760
    %v1407 = vsub.f32 %v1277, %v1406
    %v1408 = vand.u32 %v1407, 4294901760
    %v1409 = vsub.f32 %v1407, %v1408
    %v1410 = vand.u32 %v1409, 4294901760
    %1411 = vmatpush1.xpose.msra.mxu0 %v1410
    %1412 = vmatprep.subr.mxu0 0.0
    %v1413 = vand.u32 %v1280, 4294901760
    %v1414 = vsub.f32 %v1280, %v1413
    %v1415 = vand.u32 %v1414, 4294901760
    %v1416 = vsub.f32 %v1414, %v1415
    %v1417 = vand.u32 %v1416, 4294901760
    %1418 = vmatpush1.xpose.msra.mxu0 %v1417
    %1419 = vmatprep.subr.mxu0 0.0
    %1420 = vmatpush1.xpose.msra.mxu0 0.0
    %1421 = vmatprep.subr.mxu0 0.0
    %1422 = vmatpush1.xpose.msra.mxu0 0.0
    %1423 = vmatprep.subr.mxu0 0.0
    %1424 = vmatpush1.xpose.msra.mxu0 0.0
    %1425 = vmatprep.subr.mxu0 0.0
    %1426 = vmatpush1.xpose.msra.mxu0 0.0
    %1427 = vmatprep.subr.mxu0 0.0
    %1428 = vmatpush1.xpose.msra.mxu0 0.0
    %1429 = vmatprep.subr.mxu0 0.0
    %1430 = vmatpush1.xpose.msra.mxu0 0.0
    %1431 = vmatprep.subr.mxu0 0.0
    %1432 = vmatpush1.xpose.msra.mxu0 0.0
    %1433 = vmatprep.subr.mxu0 0.0
    %1434 = vmatpush1.xpose.msra.mxu0 0.0
    %1435 = vmatprep.subr.mxu0 0.0
    %1436 = vmatpush1.xpose.msra.mxu0 0.0
    %1437 = vmatprep.subr.mxu0 0.0
    %1438 = vmatpush1.xpose.msra.mxu0 0.0
    %1439 = vmatprep.subr.mxu0 0.0
    %1440 = vmatpush1.xpose.msra.mxu0 0.0
    %1441 = vmatprep.subr.mxu0 0.0
    %1442 = vmatpush1.xpose.msra.mxu0 0.0
    %1443 = vmatprep.subr.mxu0 0.0
    %1444 = vmatpush1.xpose.msra.mxu0 0.0
    %1445 = vmatprep.subr.mxu0 0.0
    %1446 = vmatpush1.xpose.msra.mxu0 0.0
    %1447 = vmatprep.subr.mxu0 0.0
    %1448 = vmatpush1.xpose.msra.mxu0 0.0
    %1449 = vmatprep.subr.mxu0 0.0
    %1450 = vmatpush1.xpose.msra.mxu0 0.0
    %1451 = vmatprep.subr.mxu0 0.0
    %1452 = vmatpush1.xpose.msra.mxu0 0.0
    %1453 = vmatprep.subr.mxu0 0.0
    %1454 = vmatpush1.xpose.msra.mxu0 0.0
    %1455 = vmatprep.subr.mxu0 0.0
    %1456 = vmatpush1.xpose.msra.mxu0 0.0
    %1457 = vmatprep.subr.mxu0 0.0
    %1458 = vmatpush1.xpose.msra.mxu0 0.0
    %1459 = vmatprep.subr.mxu0 0.0
    %1460 = vmatpush1.xpose.msra.mxu0 0.0
    %1461 = vmatprep.subr.mxu0 0.0
    %1462 = vmatpush1.xpose.msra.mxu0 0.0
    %1463 = vmatprep.subr.mxu0 0.0
    %1464 = vmatpush1.xpose.msra.mxu0 0.0
    %1465 = vmatprep.subr.mxu0 0.0
    %1466 = vmatpush1.xpose.msra.mxu0 0.0
    %1467 = vmatprep.subr.mxu0 0.0
    %1468 = vmatpush1.xpose.msra.mxu0 0.0
    %1469 = vmatprep.subr.mxu0 0.0
    %1470 = vmatpush1.xpose.msra.mxu0 0.0
    %1471 = vmatprep.subr.mxu0 0.0
    %1472 = vmatpush1.xpose.msra.mxu0 0.0
    %1473 = vmatprep.subr.mxu0 0.0
    %1474 = vmatpush1.xpose.msra.mxu0 0.0
    %1475 = vmatprep.mubr.f32.mxu0 0.0
    %v1476 = vand.u32 %v1271, 4294901760
    %1477 = vmatmul.mubr.f32.gmra.mrb[0].mxu0 %v1476
    %v1478 = vpop.f32.mrb[0].mxu0
    %v1479 = vadd.f32 %v1358, %v1478
    %v1480 = vpop.f32.mrb[0].mxu0
    %1481 = vmatprep.mubr.f32.mxu0 0.0
    %v1482 = vand.u32 %v1274, 4294901760
    %1483 = vmatmul.mubr.f32.gmra.mrb[0].mxu0 %v1482
    %v1484 = vpop.f32.mrb[0].mxu0
    %v1485 = vadd.f32 %v1368, %v1484
    %v1486 = vpop.f32.mrb[0].mxu0
    %1487 = vmatprep.mubr.f32.mxu0 0.0
    %v1488 = vand.u32 %v1277, 4294901760
    %1489 = vmatmul.mubr.f32.gmra.mrb[0].mxu0 %v1488
    %v1490 = vpop.f32.mrb[0].mxu0
    %v1491 = vadd.f32 %v1378, %v1490
    %v1492 = vpop.f32.mrb[0].mxu0
    %1493 = vmatprep.mubr.f32.mxu0 0.0
    %v1494 = vand.u32 %v1280, 4294901760
    %1495 = vmatmul.mubr.f32.gmra.mrb[0].mxu0 %v1494
    %v1496 = vpop.f32.mrb[0].mxu0
    %v1497 = vadd.f32 %v1388, %v1496
    %v1498 = vpop.f32.mrb[0].mxu0
    %1499 = vdwg.mxu0
    %1500 = vmatprep.subr.mxu0 0.0
    %v1501 = vand.u32 %v1271, 4294901760
    %v1502 = vsub.f32 %v1271, %v1501
    %1503 = vmatpush1.xpose.msra.mxu0 %v1502
    %1504 = vmatprep.subr.mxu0 0.0
    %v1505 = vand.u32 %v1274, 4294901760
    %v1506 = vsub.f32 %v1274, %v1505
    %1507 = vmatpush1.xpose.msra.mxu0 %v1506
    %1508 = vmatprep.subr.mxu0 0.0
    %v1509 = vand.u32 %v1277, 4294901760
    %v1510 = vsub.f32 %v1277, %v1509
    %1511 = vmatpush1.xpose.msra.mxu0 %v1510
    %1512 = vmatprep.subr.mxu0 0.0
    %v1513 = vand.u32 %v1280, 4294901760
    %v1514 = vsub.f32 %v1280, %v1513
    %1515 = vmatpush1.xpose.msra.mxu0 %v1514
    %1516 = vmatprep.subr.mxu0 0.0
    %1517 = vmatpush1.xpose.msra.mxu0 0.0
    %1518 = vmatprep.subr.mxu0 0.0
    %1519 = vmatpush1.xpose.msra.mxu0 0.0
    %1520 = vmatprep.subr.mxu0 0.0
    %1521 = vmatpush1.xpose.msra.mxu0 0.0
    %1522 = vmatprep.subr.mxu0 0.0
    %1523 = vmatpush1.xpose.msra.mxu0 0.0
    %1524 = vmatprep.subr.mxu0 0.0
    %1525 = vmatpush1.xpose.msra.mxu0 0.0
    %1526 = vmatprep.subr.mxu0 0.0
    %1527 = vmatpush1.xpose.msra.mxu0 0.0
    %1528 = vmatprep.subr.mxu0 0.0
    %1529 = vmatpush1.xpose.msra.mxu0 0.0
    %1530 = vmatprep.subr.mxu0 0.0
    %1531 = vmatpush1.xpose.msra.mxu0 0.0
    %1532 = vmatprep.subr.mxu0 0.0
    %1533 = vmatpush1.xpose.msra.mxu0 0.0
    %1534 = vmatprep.subr.mxu0 0.0
    %1535 = vmatpush1.xpose.msra.mxu0 0.0
    %1536 = vmatprep.subr.mxu0 0.0
    %1537 = vmatpush1.xpose.msra.mxu0 0.0
    %1538 = vmatprep.subr.mxu0 0.0
    %1539 = vmatpush1.xpose.msra.mxu0 0.0
    %1540 = vmatprep.subr.mxu0 0.0
    %1541 = vmatpush1.xpose.msra.mxu0 0.0
    %1542 = vmatprep.subr.mxu0 0.0
    %1543 = vmatpush1.xpose.msra.mxu0 0.0
    %1544 = vmatprep.subr.mxu0 0.0
    %1545 = vmatpush1.xpose.msra.mxu0 0.0
    %1546 = vmatprep.subr.mxu0 0.0
    %1547 = vmatpush1.xpose.msra.mxu0 0.0
    %1548 = vmatprep.subr.mxu0 0.0
    %1549 = vmatpush1.xpose.msra.mxu0 0.0
    %1550 = vmatprep.subr.mxu0 0.0
    %1551 = vmatpush1.xpose.msra.mxu0 0.0
    %1552 = vmatprep.subr.mxu0 0.0
    %1553 = vmatpush1.xpose.msra.mxu0 0.0
    %1554 = vmatprep.subr.mxu0 0.0
    %1555 = vmatpush1.xpose.msra.mxu0 0.0
    %1556 = vmatprep.subr.mxu0 0.0
    %1557 = vmatpush1.xpose.msra.mxu0 0.0
    %1558 = vmatprep.subr.mxu0 0.0
    %1559 = vmatpush1.xpose.msra.mxu0 0.0
    %1560 = vmatprep.subr.mxu0 0.0
    %1561 = vmatpush1.xpose.msra.mxu0 0.0
    %1562 = vmatprep.subr.mxu0 0.0
    %1563 = vmatpush1.xpose.msra.mxu0 0.0
    %1564 = vmatprep.subr.mxu0 0.0
    %1565 = vmatpush1.xpose.msra.mxu0 0.0
    %1566 = vmatprep.subr.mxu0 0.0
    %1567 = vmatpush1.xpose.msra.mxu0 0.0
    %1568 = vmatprep.subr.mxu0 0.0
    %1569 = vmatpush1.xpose.msra.mxu0 0.0
    %1570 = vmatprep.subr.mxu0 0.0
    %1571 = vmatpush1.xpose.msra.mxu0 0.0
    %1572 = vmatprep.mubr.f32.mxu0 0.0
    %v1573 = vand.u32 %v1271, 4294901760
    %v1574 = vsub.f32 %v1271, %v1573
    %1575 = vmatmul.mubr.f32.gmra.mrb[0].mxu0 %v1574
    %v1576 = vpop.f32.mrb[0].mxu0
    %v1577 = vadd.f32 %v1479, %v1576
    %v1578 = vpop.f32.mrb[0].mxu0
    %1579 = vmatprep.mubr.f32.mxu0 0.0
    %v1580 = vand.u32 %v1274, 4294901760
    %v1581 = vsub.f32 %v1274, %v1580
    %1582 = vmatmul.mubr.f32.gmra.mrb[0].mxu0 %v1581
    %v1583 = vpop.f32.mrb[0].mxu0
    %v1584 = vadd.f32 %v1485, %v1583
    %v1585 = vpop.f32.mrb[0].mxu0
    %1586 = vmatprep.mubr.f32.mxu0 0.0
    %v1587 = vand.u32 %v1277, 4294901760
    %v1588 = vsub.f32 %v1277, %v1587
    %1589 = vmatmul.mubr.f32.gmra.mrb[0].mxu0 %v1588
    %v1590 = vpop.f32.mrb[0].mxu0
    %v1591 = vadd.f32 %v1491, %v1590
    %v1592 = vpop.f32.mrb[0].mxu0
    %1593 = vmatprep.mubr.f32.mxu0 0.0
    %v1594 = vand.u32 %v1280, 4294901760
    %v1595 = vsub.f32 %v1280, %v1594
    %1596 = vmatmul.mubr.f32.gmra.mrb[0].mxu0 %v1595
    %v1597 = vpop.f32.mrb[0].mxu0
    %v1598 = vadd.f32 %v1497, %v1597
    %v1599 = vpop.f32.mrb[0].mxu0
    %1600 = vdwg.mxu0
    %1601 = vmatprep.subr.mxu0 0.0
    %v1602 = vand.u32 %v1271, 4294901760
    %1603 = vmatpush1.xpose.msra.mxu0 %v1602
    %1604 = vmatprep.subr.mxu0 0.0
    %v1605 = vand.u32 %v1274, 4294901760
    %1606 = vmatpush1.xpose.msra.mxu0 %v1605
    %1607 = vmatprep.subr.mxu0 0.0
    %v1608 = vand.u32 %v1277, 4294901760
    %1609 = vmatpush1.xpose.msra.mxu0 %v1608
    %1610 = vmatprep.subr.mxu0 0.0
    %v1611 = vand.u32 %v1280, 4294901760
    %1612 = vmatpush1.xpose.msra.mxu0 %v1611
    %1613 = vmatprep.subr.mxu0 0.0
    %1614 = vmatpush1.xpose.msra.mxu0 0.0
    %1615 = vmatprep.subr.mxu0 0.0
    %1616 = vmatpush1.xpose.msra.mxu0 0.0
    %1617 = vmatprep.subr.mxu0 0.0
    %1618 = vmatpush1.xpose.msra.mxu0 0.0
    %1619 = vmatprep.subr.mxu0 0.0
    %1620 = vmatpush1.xpose.msra.mxu0 0.0
    %1621 = vmatprep.subr.mxu0 0.0
    %1622 = vmatpush1.xpose.msra.mxu0 0.0
    %1623 = vmatprep.subr.mxu0 0.0
    %1624 = vmatpush1.xpose.msra.mxu0 0.0
    %1625 = vmatprep.subr.mxu0 0.0
    %1626 = vmatpush1.xpose.msra.mxu0 0.0
    %1627 = vmatprep.subr.mxu0 0.0
    %1628 = vmatpush1.xpose.msra.mxu0 0.0
    %1629 = vmatprep.subr.mxu0 0.0
    %1630 = vmatpush1.xpose.msra.mxu0 0.0
    %1631 = vmatprep.subr.mxu0 0.0
    %1632 = vmatpush1.xpose.msra.mxu0 0.0
    %1633 = vmatprep.subr.mxu0 0.0
    %1634 = vmatpush1.xpose.msra.mxu0 0.0
    %1635 = vmatprep.subr.mxu0 0.0
    %1636 = vmatpush1.xpose.msra.mxu0 0.0
    %1637 = vmatprep.subr.mxu0 0.0
    %1638 = vmatpush1.xpose.msra.mxu0 0.0
    %1639 = vmatprep.subr.mxu0 0.0
    %1640 = vmatpush1.xpose.msra.mxu0 0.0
    %1641 = vmatprep.subr.mxu0 0.0
    %1642 = vmatpush1.xpose.msra.mxu0 0.0
    %1643 = vmatprep.subr.mxu0 0.0
    %1644 = vmatpush1.xpose.msra.mxu0 0.0
    %1645 = vmatprep.subr.mxu0 0.0
    %1646 = vmatpush1.xpose.msra.mxu0 0.0
    %1647 = vmatprep.subr.mxu0 0.0
    %1648 = vmatpush1.xpose.msra.mxu0 0.0
    %1649 = vmatprep.subr.mxu0 0.0
    %1650 = vmatpush1.xpose.msra.mxu0 0.0
    %1651 = vmatprep.subr.mxu0 0.0
    %1652 = vmatpush1.xpose.msra.mxu0 0.0
    %1653 = vmatprep.subr.mxu0 0.0
    %1654 = vmatpush1.xpose.msra.mxu0 0.0
    %1655 = vmatprep.subr.mxu0 0.0
    %1656 = vmatpush1.xpose.msra.mxu0 0.0
    %1657 = vmatprep.subr.mxu0 0.0
    %1658 = vmatpush1.xpose.msra.mxu0 0.0
    %1659 = vmatprep.subr.mxu0 0.0
    %1660 = vmatpush1.xpose.msra.mxu0 0.0
    %1661 = vmatprep.subr.mxu0 0.0
    %1662 = vmatpush1.xpose.msra.mxu0 0.0
    %1663 = vmatprep.subr.mxu0 0.0
    %1664 = vmatpush1.xpose.msra.mxu0 0.0
    %1665 = vmatprep.subr.mxu0 0.0
    %1666 = vmatpush1.xpose.msra.mxu0 0.0
    %1667 = vmatprep.subr.mxu0 0.0
    %1668 = vmatpush1.xpose.msra.mxu0 0.0
    %1669 = vmatprep.mubr.f32.mxu0 0.0
    %v1670 = vand.u32 %v1271, 4294901760
    %v1671 = vsub.f32 %v1271, %v1670
    %v1672 = vand.u32 %v1671, 4294901760
    %1673 = vmatmul.mubr.f32.gmra.mrb[0].mxu0 %v1672
    %v1674 = vpop.f32.mrb[0].mxu0
    %v1675 = vadd.f32 %v1577, %v1674
    %v1676 = vpop.f32.mrb[0].mxu0
    %1677 = vmatprep.mubr.f32.mxu0 0.0
    %v1678 = vand.u32 %v1274, 4294901760
    %v1679 = vsub.f32 %v1274, %v1678
    %v1680 = vand.u32 %v1679, 4294901760
    %1681 = vmatmul.mubr.f32.gmra.mrb[0].mxu0 %v1680
    %v1682 = vpop.f32.mrb[0].mxu0
    %v1683 = vadd.f32 %v1584, %v1682
    %v1684 = vpop.f32.mrb[0].mxu0
    %1685 = vmatprep.mubr.f32.mxu0 0.0
    %v1686 = vand.u32 %v1277, 4294901760
    %v1687 = vsub.f32 %v1277, %v1686
    %v1688 = vand.u32 %v1687, 4294901760
    %1689 = vmatmul.mubr.f32.gmra.mrb[0].mxu0 %v1688
    %v1690 = vpop.f32.mrb[0].mxu0
    %v1691 = vadd.f32 %v1591, %v1690
    %v1692 = vpop.f32.mrb[0].mxu0
    %1693 = vmatprep.mubr.f32.mxu0 0.0
    %v1694 = vand.u32 %v1280, 4294901760
    %v1695 = vsub.f32 %v1280, %v1694
    %v1696 = vand.u32 %v1695, 4294901760
    %1697 = vmatmul.mubr.f32.gmra.mrb[0].mxu0 %v1696
    %v1698 = vpop.f32.mrb[0].mxu0
    %v1699 = vadd.f32 %v1598, %v1698
    %v1700 = vpop.f32.mrb[0].mxu0
    %1701 = vdwg.mxu0
    %1702 = vmatprep.subr.mxu0 0.0
    %v1703 = vand.u32 %v1271, 4294901760
    %v1704 = vsub.f32 %v1271, %v1703
    %v1705 = vand.u32 %v1704, 4294901760
    %1706 = vmatpush1.xpose.msra.mxu0 %v1705
    %1707 = vmatprep.subr.mxu0 0.0
    %v1708 = vand.u32 %v1274, 4294901760
    %v1709 = vsub.f32 %v1274, %v1708
    %v1710 = vand.u32 %v1709, 4294901760
    %1711 = vmatpush1.xpose.msra.mxu0 %v1710
    %1712 = vmatprep.subr.mxu0 0.0
    %v1713 = vand.u32 %v1277, 4294901760
    %v1714 = vsub.f32 %v1277, %v1713
    %v1715 = vand.u32 %v1714, 4294901760
    %1716 = vmatpush1.xpose.msra.mxu0 %v1715
    %1717 = vmatprep.subr.mxu0 0.0
    %v1718 = vand.u32 %v1280, 4294901760
    %v1719 = vsub.f32 %v1280, %v1718
    %v1720 = vand.u32 %v1719, 4294901760
    %1721 = vmatpush1.xpose.msra.mxu0 %v1720
    %1722 = vmatprep.subr.mxu0 0.0
    %1723 = vmatpush1.xpose.msra.mxu0 0.0
    %1724 = vmatprep.subr.mxu0 0.0
    %1725 = vmatpush1.xpose.msra.mxu0 0.0
    %1726 = vmatprep.subr.mxu0 0.0
    %1727 = vmatpush1.xpose.msra.mxu0 0.0
    %1728 = vmatprep.subr.mxu0 0.0
    %1729 = vmatpush1.xpose.msra.mxu0 0.0
    %1730 = vmatprep.subr.mxu0 0.0
    %1731 = vmatpush1.xpose.msra.mxu0 0.0
    %1732 = vmatprep.subr.mxu0 0.0
    %1733 = vmatpush1.xpose.msra.mxu0 0.0
    %1734 = vmatprep.subr.mxu0 0.0
    %1735 = vmatpush1.xpose.msra.mxu0 0.0
    %1736 = vmatprep.subr.mxu0 0.0
    %1737 = vmatpush1.xpose.msra.mxu0 0.0
    %1738 = vmatprep.subr.mxu0 0.0
    %1739 = vmatpush1.xpose.msra.mxu0 0.0
    %1740 = vmatprep.subr.mxu0 0.0
    %1741 = vmatpush1.xpose.msra.mxu0 0.0
    %1742 = vmatprep.subr.mxu0 0.0
    %1743 = vmatpush1.xpose.msra.mxu0 0.0
    %1744 = vmatprep.subr.mxu0 0.0
    %1745 = vmatpush1.xpose.msra.mxu0 0.0
    %1746 = vmatprep.subr.mxu0 0.0
    %1747 = vmatpush1.xpose.msra.mxu0 0.0
    %1748 = vmatprep.subr.mxu0 0.0
    %1749 = vmatpush1.xpose.msra.mxu0 0.0
    %1750 = vmatprep.subr.mxu0 0.0
    %1751 = vmatpush1.xpose.msra.mxu0 0.0
    %1752 = vmatprep.subr.mxu0 0.0
    %1753 = vmatpush1.xpose.msra.mxu0 0.0
    %1754 = vmatprep.subr.mxu0 0.0
    %1755 = vmatpush1.xpose.msra.mxu0 0.0
    %1756 = vmatprep.subr.mxu0 0.0
    %1757 = vmatpush1.xpose.msra.mxu0 0.0
    %1758 = vmatprep.subr.mxu0 0.0
    %1759 = vmatpush1.xpose.msra.mxu0 0.0
    %1760 = vmatprep.subr.mxu0 0.0
    %1761 = vmatpush1.xpose.msra.mxu0 0.0
    %1762 = vmatprep.subr.mxu0 0.0
    %1763 = vmatpush1.xpose.msra.mxu0 0.0
    %1764 = vmatprep.subr.mxu0 0.0
    %1765 = vmatpush1.xpose.msra.mxu0 0.0
    %1766 = vmatprep.subr.mxu0 0.0
    %1767 = vmatpush1.xpose.msra.mxu0 0.0
    %1768 = vmatprep.subr.mxu0 0.0
    %1769 = vmatpush1.xpose.msra.mxu0 0.0
    %1770 = vmatprep.subr.mxu0 0.0
    %1771 = vmatpush1.xpose.msra.mxu0 0.0
    %1772 = vmatprep.subr.mxu0 0.0
    %1773 = vmatpush1.xpose.msra.mxu0 0.0
    %1774 = vmatprep.subr.mxu0 0.0
    %1775 = vmatpush1.xpose.msra.mxu0 0.0
    %1776 = vmatprep.subr.mxu0 0.0
    %1777 = vmatpush1.xpose.msra.mxu0 0.0
    %1778 = vmatprep.mubr.f32.mxu0 0.0
    %v1779 = vand.u32 %v1271, 4294901760
    %1780 = vmatmul.mubr.f32.gmra.mrb[0].mxu0 %v1779
    %v1781 = vpop.f32.mrb[0].mxu0
    %v1782 = vadd.f32 %v1675, %v1781
    %v1783 = vpop.f32.mrb[0].mxu0
    %1784 = vmatprep.mubr.f32.mxu0 0.0
    %v1785 = vand.u32 %v1274, 4294901760
    %1786 = vmatmul.mubr.f32.gmra.mrb[0].mxu0 %v1785
    %v1787 = vpop.f32.mrb[0].mxu0
    %v1788 = vadd.f32 %v1683, %v1787
    %v1789 = vpop.f32.mrb[0].mxu0
    %1790 = vmatprep.mubr.f32.mxu0 0.0
    %v1791 = vand.u32 %v1277, 4294901760
    %1792 = vmatmul.mubr.f32.gmra.mrb[0].mxu0 %v1791
    %v1793 = vpop.f32.mrb[0].mxu0
    %v1794 = vadd.f32 %v1691, %v1793
    %v1795 = vpop.f32.mrb[0].mxu0
    %1796 = vmatprep.mubr.f32.mxu0 0.0
    %v1797 = vand.u32 %v1280, 4294901760
    %1798 = vmatmul.mubr.f32.gmra.mrb[0].mxu0 %v1797
    %v1799 = vpop.f32.mrb[0].mxu0
    %v1800 = vadd.f32 %v1699, %v1799
    %v1801 = vpop.f32.mrb[0].mxu0
    %1802 = vdwg.mxu0
    %1803 = vmatprep.subr.mxu0 0.0
    %v1804 = vand.u32 %v1271, 4294901760
    %1805 = vmatpush1.xpose.msra.mxu0 %v1804
    %1806 = vmatprep.subr.mxu0 0.0
    %v1807 = vand.u32 %v1274, 4294901760
    %1808 = vmatpush1.xpose.msra.mxu0 %v1807
    %1809 = vmatprep.subr.mxu0 0.0
    %v1810 = vand.u32 %v1277, 4294901760
    %1811 = vmatpush1.xpose.msra.mxu0 %v1810
    %1812 = vmatprep.subr.mxu0 0.0
    %v1813 = vand.u32 %v1280, 4294901760
    %1814 = vmatpush1.xpose.msra.mxu0 %v1813
    %1815 = vmatprep.subr.mxu0 0.0
    %1816 = vmatpush1.xpose.msra.mxu0 0.0
    %1817 = vmatprep.subr.mxu0 0.0
    %1818 = vmatpush1.xpose.msra.mxu0 0.0
    %1819 = vmatprep.subr.mxu0 0.0
    %1820 = vmatpush1.xpose.msra.mxu0 0.0
    %1821 = vmatprep.subr.mxu0 0.0
    %1822 = vmatpush1.xpose.msra.mxu0 0.0
    %1823 = vmatprep.subr.mxu0 0.0
    %1824 = vmatpush1.xpose.msra.mxu0 0.0
    %1825 = vmatprep.subr.mxu0 0.0
    %1826 = vmatpush1.xpose.msra.mxu0 0.0
    %1827 = vmatprep.subr.mxu0 0.0
    %1828 = vmatpush1.xpose.msra.mxu0 0.0
    %1829 = vmatprep.subr.mxu0 0.0
    %1830 = vmatpush1.xpose.msra.mxu0 0.0
    %1831 = vmatprep.subr.mxu0 0.0
    %1832 = vmatpush1.xpose.msra.mxu0 0.0
    %1833 = vmatprep.subr.mxu0 0.0
    %1834 = vmatpush1.xpose.msra.mxu0 0.0
    %1835 = vmatprep.subr.mxu0 0.0
    %1836 = vmatpush1.xpose.msra.mxu0 0.0
    %1837 = vmatprep.subr.mxu0 0.0
    %1838 = vmatpush1.xpose.msra.mxu0 0.0
    %1839 = vmatprep.subr.mxu0 0.0
    %1840 = vmatpush1.xpose.msra.mxu0 0.0
    %1841 = vmatprep.subr.mxu0 0.0
    %1842 = vmatpush1.xpose.msra.mxu0 0.0
    %1843 = vmatprep.subr.mxu0 0.0
    %1844 = vmatpush1.xpose.msra.mxu0 0.0
    %1845 = vmatprep.subr.mxu0 0.0
    %1846 = vmatpush1.xpose.msra.mxu0 0.0
    %1847 = vmatprep.subr.mxu0 0.0
    %1848 = vmatpush1.xpose.msra.mxu0 0.0
    %1849 = vmatprep.subr.mxu0 0.0
    %1850 = vmatpush1.xpose.msra.mxu0 0.0
    %1851 = vmatprep.subr.mxu0 0.0
    %1852 = vmatpush1.xpose.msra.mxu0 0.0
    %1853 = vmatprep.subr.mxu0 0.0
    %1854 = vmatpush1.xpose.msra.mxu0 0.0
    %1855 = vmatprep.subr.mxu0 0.0
    %1856 = vmatpush1.xpose.msra.mxu0 0.0
    %1857 = vmatprep.subr.mxu0 0.0
    %1858 = vmatpush1.xpose.msra.mxu0 0.0
    %1859 = vmatprep.subr.mxu0 0.0
    %1860 = vmatpush1.xpose.msra.mxu0 0.0
    %1861 = vmatprep.subr.mxu0 0.0
    %1862 = vmatpush1.xpose.msra.mxu0 0.0
    %1863 = vmatprep.subr.mxu0 0.0
    %1864 = vmatpush1.xpose.msra.mxu0 0.0
    %1865 = vmatprep.subr.mxu0 0.0
    %1866 = vmatpush1.xpose.msra.mxu0 0.0
    %1867 = vmatprep.subr.mxu0 0.0
    %1868 = vmatpush1.xpose.msra.mxu0 0.0
    %1869 = vmatprep.subr.mxu0 0.0
    %1870 = vmatpush1.xpose.msra.mxu0 0.0
    %1871 = vmatprep.mubr.f32.mxu0 0.0
    %v1872 = vand.u32 %v1271, 4294901760
    %1873 = vmatmul.mubr.f32.gmra.mrb[0].mxu0 %v1872
    %v1874 = vpop.f32.mrb[0].mxu0
    %v1875 = vadd.f32 %v1782, %v1874
    %v1876 = vpop.f32.mrb[0].mxu0
    %1877 = vmatprep.mubr.f32.mxu0 0.0
    %v1878 = vand.u32 %v1274, 4294901760
    %1879 = vmatmul.mubr.f32.gmra.mrb[0].mxu0 %v1878
    %v1880 = vpop.f32.mrb[0].mxu0
    %v1881 = vadd.f32 %v1788, %v1880
    %v1882 = vpop.f32.mrb[0].mxu0
    %1883 = vmatprep.mubr.f32.mxu0 0.0
    %v1884 = vand.u32 %v1277, 4294901760
    %1885 = vmatmul.mubr.f32.gmra.mrb[0].mxu0 %v1884
    %v1886 = vpop.f32.mrb[0].mxu0
    %v1887 = vadd.f32 %v1794, %v1886
    %v1888 = vpop.f32.mrb[0].mxu0
    %1889 = vmatprep.mubr.f32.mxu0 0.0
    %v1890 = vand.u32 %v1280, 4294901760
    %1891 = vmatmul.mubr.f32.gmra.mrb[0].mxu0 %v1890
    %v1892 = vpop.f32.mrb[0].mxu0
    %v1893 = vadd.f32 %v1800, %v1892
    %v1894 = vpop.f32.mrb[0].mxu0
    %1895 = vdwg.mxu0
    %v1896 = vmul.f32 %v1266, %v1268
    %v1897 = vmul.f32 %v1267, %v1269
    %v1898 = vsel %vm29, %v1896, 0.0
    %1899 = vadd.xlane.f32.xlu0 %v1898
    %v1900 = vpop.xlane.xlu0 %1899
    %v1901 = vsel %vm29, %v1897, 0.0
    %1902 = vadd.xlane.f32.xlu0 %v1901
    %v1903 = vpop.xlane.xlu0 %1902
    %v1904 = vlaneseq
    %v1905 = vshrl.u32 %v1904, 7
    %v1906 = vadd.s32 %v1905, 8
    %v1907 = vadd.s32 %v1905, 16
    %v1908 = vadd.s32 %v1905, 24
    %v1909 = vlaneseq
    %v1910 = vand.u32 %v1909, 127
    %vm1911 = vcmp.eq.s32.totalorder %v1905, %v1910
    %vm1912 = vcmp.eq.s32.totalorder %v1906, %v1910
    %vm1913 = vcmp.eq.s32.totalorder %v1907, %v1910
    %vm1914 = vcmp.eq.s32.totalorder %v1908, %v1910
    %v1915 = vsel %vm1911, -1e+30, %v1875
    %v1916 = vsel %vm1912, -1e+30, %v1881
    %v1917 = vsel %vm1913, -1e+30, %v1887
    %v1918 = vsel %vm1914, -1e+30, %v1893
    %v1919 = vsub.f32 %v1915, 10.0
    %v1920 = vsub.f32 %v1916, 10.0
    %v1921 = vsub.f32 %v1917, 10.0
    %v1922 = vsub.f32 %v1918, 10.0
    %v1923 = vmul.f32 %v1919, 1.442695
    %v1924 = vpow.pop %v1923
    %v1925 = vmul.f32 %v1920, 1.442695
    %v1926 = vpow.pop %v1925
    %v1927 = vmul.f32 %v1921, 1.442695
    %v1928 = vpow.pop %v1927
    %v1929 = vmul.f32 %v1922, 1.442695
    %v1930 = vpow.pop %v1929
    %vm1931 = vcmask 261120
    %v1932 = vsel %vm1931, %v1924, 0.0
    %1933 = vadd.xlane.f32.xlu0 %v1932
    %v1934 = vpop.xlane.xlu0 %1933
    %v1935 = vsel %vm1931, %v1926, 0.0
    %1936 = vadd.xlane.f32.xlu0 %v1935
    %v1937 = vpop.xlane.xlu0 %1936
    %v1938 = vsel %vm1931, %v1928, 0.0
    %1939 = vadd.xlane.f32.xlu0 %v1938
    %v1940 = vpop.xlane.xlu0 %1939
    %v1941 = vsel %vm1931, %v1930, 0.0
    %1942 = vadd.xlane.f32.xlu0 %v1941
    %v1943 = vpop.xlane.xlu0 %1942
    %v1944 = vlog2.pop %v1934
    %v1945 = vmul.f32 %v1944, 0.6931472
    %v1946 = vlog2.pop %v1937
    %v1947 = vmul.f32 %v1946, 0.6931472
    %v1948 = vlog2.pop %v1940
    %v1949 = vmul.f32 %v1948, 0.6931472
    %v1950 = vlog2.pop %v1943
    %v1951 = vmul.f32 %v1950, 0.6931472
    %v1952 = vadd.f32 %v1945, 10.0
    %v1953 = vadd.f32 %v1947, 10.0
    %v1954 = vadd.f32 %v1949, 10.0
    %v1955 = vadd.f32 %v1951, 10.0
    %vm1956 = vcmask 7168
    %v1957 = vsel %vm1956, %v1952, 0.0
    %v1958 = vsel %vm1956, %v1953, 0.0
    %v1959 = vadd.f32 %v1957, %v1958
    %v1960 = vsel %vm1956, %v1954, 0.0
    %v1961 = vadd.f32 %v1959, %v1960
    %v1962 = vsel %vm1956, %v1955, 0.0
    %v1963 = vadd.f32 %v1961, %v1962
    %1964 = vadd.xlane.f32.xlu0 %v1963
    %v1965 = vpop.xlane.xlu0 %1964
    %v1966 = vrot.slane %v1965, 4
    %v1967 = vadd.f32 %v1965, %v1966
    %v1968 = vrot.slane %v1967, 2
    %v1969 = vadd.f32 %v1967, %v1968
    %v1970 = vrot.slane %v1969, 1
    %v1971 = vadd.f32 %v1969, %v1970
    %s1972 = vtos %v1971
    %v1973 = vsel %vm1956, %v1900, 0.0
    %v1974 = vsel %vm1956, %v1903, 0.0
    %v1975 = vadd.f32 %v1973, %v1974
    %1976 = vadd.xlane.f32.xlu0 %v1975
    %v1977 = vpop.xlane.xlu0 %1976
    %v1978 = vrot.slane %v1977, 4
    %v1979 = vadd.f32 %v1977, %v1978
    %v1980 = vrot.slane %v1979, 2
    %v1981 = vadd.f32 %v1979, %v1980
    %v1982 = vrot.slane %v1981, 1
    %v1983 = vadd.f32 %v1981, %v1982
    %s1984 = vtos %v1983
    %s1985 = smul.f32 %s1984, 2.0
    %s1986 = ssub.f32 %s1972, %s1985
    %s1987 = smul.f32 %s1986, 0.03125
    %s1988 = scalar_lea.smem [#allocation2], 0
    %1989 = sst [smem:[%s1988]] %s1987
    // Predicated region
    $region14: #{tpu_custom_call.1} parent=1 // pred_check
      _
    $region15: #{tpu_custom_call.1} parent=1 // pred_check_branch
      %1991 = sbr.rel (0) target = $region17
    $region16: #{tpu_custom_call.1} parent=1 // pred_region
      %s1993 = ssub.s32 16, 16
      %1994 = vsyncadd [#allocation3], %s1993
      %1997 = dma.smem_to_hbm [#allocation2], 16, %s3, [#allocation3]
    $region17: #{tpu_custom_call.1} parent=1 // pred_fallthru
      _
    // Predicated region
    $region18: #{tpu_custom_call.1} parent=1 // pred_check
      _
    $region19: #{tpu_custom_call.1} parent=1 // pred_check_branch
      %1999 = sbr.rel (0) target = $region21
    $region20: #{tpu_custom_call.1} parent=1 // pred_region
      %2000 = dma.done [#allocation3], 16
    $region21: #{tpu_custom_call.1} parent=1 // pred_fallthru
      _
    %2001 = sfence
    %2002 = vsyncpa [#allocation3], 1

</llo_original>
